<compile_context>
chip_gen: v7x
topology: tpu7x:2x2x1
jax: 0.10.0
libtpu: 0.0.40
codegen_flags: <defaults>
</compile_context>

<pallas_src>
import functools

import jax
import jax.numpy as jnp
from jax.experimental import pallas as pl
from jax.experimental.pallas import tpu as pltpu


def _cdiv(a, b):
    return -(-a // b)


def _round_up(x, m):
    return _cdiv(x, m) * m


def _vmem_budget_bytes():
    """Bytes available for double-buffered activation blocks (leave headroom)."""
    cap = 64 * 1024 * 1024  # conservative default: v7x per-TC physical VMEM
    try:
        info = pltpu.get_tpu_info()
        cap = int(getattr(info, "vmem_capacity_bytes", cap))
    except Exception:
        pass
    return max(8 * 1024 * 1024, min(24 * 1024 * 1024, cap // 3))


def _choose_spatial_tile(S, bytes_per_lane, batch, vmem_budget, min_grid_steps=2):
    """Lane tile: 128-multiple, sized by a VMEM bytes budget, >=2 grid steps."""
    # Double-buffered input + output blocks dominate live VMEM.
    max_by_vmem = vmem_budget // (2 * max(1, bytes_per_lane))
    tile = max(128, (max_by_vmem // 128) * 128)
    tile = min(tile, _round_up(S, 128))
    # Keep at least `min_grid_steps` total grid steps so both v7x TCs get work.
    if batch * _cdiv(S, tile) < min_grid_steps and S > 128:
        spatial_steps = _cdiv(min_grid_steps, batch)
        tile = min(tile, max(128, _round_up(_cdiv(S, spatial_steps), 128)))
    return tile


def _fused_conv1x1_kernel(*refs, n_in, n_out, relu, has_bias):
    """out_k = relu((w_eff @ sum(inputs)) + bias) on a (C, S_tile) slab."""
    in_refs = refs[:n_in]
    w_ref = refs[n_in]
    bias_ref = refs[n_in + 1] if has_bias else None
    out_refs = refs[len(refs) - n_out:]

    # Sum of input streams (residual add fused); f32 compute (v5e-safe).
    x = in_refs[0][0].astype(jnp.float32)            # (Cin, tile)
    for r in in_refs[1:]:
        x = x + r[0].astype(jnp.float32)

    # (Cout, Cin) @ (Cin, tile) -> (Cout, tile), f32 accumulation.  The op is
    # memory-bound at these channel counts; the tiny matmul is fine.
    y = jnp.dot(w_ref[...], x, preferred_element_type=jnp.float32)

    if has_bias:
        y = y + bias_ref[...]                        # (Cout, 1) bcast over lanes
    if relu:
        y = jnp.maximum(y, 0.0)
    for o_ref in out_refs:
        o_ref[0] = y.astype(o_ref.dtype)


def fused_conv1x1(inputs, w_t, bias, *, relu, out_dtypes=(jnp.float32,)):
    """Fused 1x1 conv on channel-major slabs.

    inputs:     list of (B, Cin, S) arrays (summed elementwise in-kernel),
                read in their native dtypes (no wrapper-side casts).
    w_t:        (Cout, Cin) weight (BN scale already folded into rows).
    bias:       (Cout,) folded-BN bias, or None.
    out_dtypes: one output slab per dtype (e.g. (f32, bf16) dual output).
    Returns a (B, Cout, S) array, or a tuple of them if len(out_dtypes) > 1.
    """
    B, Cin, S = inputs[0].shape
    Cout = w_t.shape[0]
    n_in = len(inputs)
    n_out = len(out_dtypes)
    has_bias = bias is not None

    bytes_per_lane = sum(int(a.shape[1]) * a.dtype.itemsize for a in inputs)
    bytes_per_lane += sum(Cout * jnp.dtype(d).itemsize for d in out_dtypes)
    tile = _choose_spatial_tile(S, bytes_per_lane, B, _vmem_budget_bytes())
    grid = (B, _cdiv(S, tile))

    args = list(inputs)                               # no dtype casts here
    args.append(w_t.astype(jnp.float32))              # tiny, resident weight
    in_specs = (
        [pl.BlockSpec((1, Cin, tile), lambda b, j: (b, 0, j)) for _ in range(n_in)]
        + [pl.BlockSpec((Cout, Cin), lambda b, j: (0, 0))]
    )
    if has_bias:
        args.append(bias.reshape(Cout, 1).astype(jnp.float32))
        in_specs.append(pl.BlockSpec((Cout, 1), lambda b, j: (0, 0)))

    if n_out == 1:
        out_shape = jax.ShapeDtypeStruct((B, Cout, S), out_dtypes[0])
        out_specs = pl.BlockSpec((1, Cout, tile), lambda b, j: (b, 0, j))
    else:
        out_shape = tuple(jax.ShapeDtypeStruct((B, Cout, S), d) for d in out_dtypes)
        out_specs = [pl.BlockSpec((1, Cout, tile), lambda b, j: (b, 0, j))
                     for _ in out_dtypes]

    kernel = functools.partial(
        _fused_conv1x1_kernel, n_in=n_in, n_out=n_out, relu=relu, has_bias=has_bias)

    out = pl.pallas_call(
        kernel,
        out_shape=out_shape,
        grid_spec=pltpu.PrefetchScalarGridSpec(
            num_scalar_prefetch=0,
            grid=grid,
            in_specs=in_specs,
            out_specs=out_specs,
        ),
        compiler_params=pltpu.CompilerParams(
            dimension_semantics=("parallel", "parallel"),
            vmem_limit_bytes=32 * 1024 * 1024,
        ),
    )(*args)
    return out


def _fold_bn(gamma, beta, mean, var, eps=1e-5):
    scale = gamma / jnp.sqrt(var + eps)
    bias = beta - mean * scale
    return scale, bias


def spectral_transform_forward(x, params):
    """x: (B, Cin, H, W) float32 NCHW -> (B, Cout, H, W) float32."""
    B, Cin, H, W = x.shape
    Ch = params["w1"].shape[0]        # out_channels // 2
    Cout = params["w2"].shape[0]
    HW = H * W

    # --- conv1: 1x1 conv + BN + ReLU (Pallas). BN scale folded into weight.
    # Dual output: f32 copy feeds rfft2, bf16 copy is re-read by conv2.
    s1, b1 = _fold_bn(*params["bn1"])
    w1_eff = params["w1"] * s1[:, None]
    x_s = x.reshape(B, Cin, HW)                       # free reshape, channel-major
    x_mid_f32, x_mid_bf16 = fused_conv1x1(
        [x_s], w1_eff, b1, relu=True,
        out_dtypes=(jnp.float32, jnp.bfloat16))       # each (B, Ch, HW)

    # --- FourierUnit ---
    # TODO(synk): FFT has no Pallas TPU primitive; rfft2/irfft2 stay XLA ops.
    x_mid = x_mid_f32.reshape(B, Ch, H, W)
    ff = jnp.fft.rfft2(x_mid, norm="ortho")           # (B, Ch, H, Wf) complex64
    Wf = ff.shape[-1]
    # Channel layout matches torch: [c0_re, c0_im, c1_re, c1_im, ...].
    ri = jnp.stack([jnp.real(ff), jnp.imag(ff)], axis=2)   # (B, Ch, 2, H, Wf)
    ri = ri.reshape(B, 2 * Ch, H * Wf)                # f32, no extra cast
    sf, bf = _fold_bn(*params["bn_fu"])
    wf_eff = params["w_fu"] * sf[:, None]
    fconv = fused_conv1x1([ri], wf_eff, bf, relu=True)      # (B, 2Ch, H*Wf) f32
    fc = fconv.reshape(B, Ch, 2, H, Wf)
    fu_out = jnp.fft.irfft2(
        jax.lax.complex(fc[:, :, 0], fc[:, :, 1]), s=(H, W), norm="ortho"
    )                                                 # (B, Ch, H, W) f32
    fu_out_s = fu_out.reshape(B, Ch, HW)

    # --- conv2 on (x_mid + fu_out); enable_lfu=False -> xs = 0. ---
    # Residual add fused in-kernel; x_mid stream read as bf16, fu_out as f32.
    out_s = fused_conv1x1([x_mid_bf16, fu_out_s], params["w2"], None, relu=False)
    return out_s.reshape(B, Cout, H, W)


def init_params(key, in_channels, out_channels):
    ch = out_channels // 2
    k1, k2, k3 = jax.random.split(key, 3)
    # Conv weights stored as (Cout, Cin) matrices (== torch weight[:, :, 0, 0]).
    w1 = 0.2 * jax.random.normal(k1, (ch, in_channels), jnp.float32)
    w_fu = 0.2 * jax.random.normal(k2, (2 * ch, 2 * ch), jnp.float32)
    w2 = 0.2 * jax.random.normal(k3, (out_channels, ch), jnp.float32)
    # BatchNorm: PyTorch-default init, inference mode (gamma, beta, mean, var).
    bn1 = (jnp.ones(ch), jnp.zeros(ch), jnp.zeros(ch), jnp.ones(ch))
    bn_fu = (jnp.ones(2 * ch), jnp.zeros(2 * ch), jnp.zeros(2 * ch), jnp.ones(2 * ch))
    return {"w1": w1, "bn1": bn1, "w_fu": w_fu, "bn_fu": bn_fu, "w2": w2}


if __name__ == "__main__":
    key = jax.random.PRNGKey(0)
    kx, kp = jax.random.split(key)

    B, Cin, H, W = 2, 4, 16, 16
    Cout = 8  # out_channels (conv1 produces Cout // 2 = 4 channels)

    x = jax.random.normal(kx, (B, Cin, H, W), jnp.float32)
    params = init_params(kp, Cin, Cout)

    out = jax.jit(spectral_transform_forward)(x, params)
    jax.block_until_ready(out)
    assert out.shape == (B, Cout, H, W), out.shape
    assert out.dtype == jnp.float32
    print("KERNEL_OK")
</pallas_src>

<mosaic_0001>
module attributes {stable_mosaic.version = 11 : i64} {
  func.func @_fused_conv1x1_kernel(%arg0: i32, %arg1: i32, %arg2: memref<1x4x256xf32, #tpu.memory_space<vmem>>, %arg3: memref<4x4xf32, #tpu.memory_space<vmem>>, %arg4: memref<4x1xf32, #tpu.memory_space<vmem>>, %arg5: memref<1x4x256xf32, #tpu.memory_space<vmem>>, %arg6: memref<1x4x256xbf16, #tpu.memory_space<vmem>>) attributes {dimension_semantics = [#tpu.dimension_semantics<parallel>, #tpu.dimension_semantics<parallel>], iteration_bounds = array<i64: 2, 1>, scalar_prefetch = 0 : i64, scratch_operands = 0 : i64, tpu.core_type = #tpu.core_type<tc>, window_params = [{transform_indices = @transform_0, window_bounds = array<i64: 1, 4, 256>}, {pipeline_mode = #tpu.pipeline_mode<synchronous>, transform_indices = @transform_1, window_bounds = array<i64: 4, 4>}, {pipeline_mode = #tpu.pipeline_mode<synchronous>, transform_indices = @transform_2, window_bounds = array<i64: 4, 1>}, {transform_indices = @transform_3, window_bounds = array<i64: 1, 4, 256>}, {transform_indices = @transform_4, window_bounds = array<i64: 1, 4, 256>}]} {
    %c0 = arith.constant 0 : index
    %c0_0 = arith.constant 0 : index
    %c0_1 = arith.constant 0 : index
    %0 = vector.load %arg2[%c0, %c0_0, %c0_1] : memref<1x4x256xf32, #tpu.memory_space<vmem>>, vector<1x4x256xf32>
    %1 = vector.shape_cast %0 : vector<1x4x256xf32> to vector<4x256xf32>
    %c0_2 = arith.constant 0 : index
    %c0_3 = arith.constant 0 : index
    %2 = vector.load %arg3[%c0_2, %c0_3] : memref<4x4xf32, #tpu.memory_space<vmem>>, vector<4x4xf32>
    %cst = arith.constant dense<0.000000e+00> : vector<4x256xf32>
    %3 = tpu.matmul %2, %1, %cst {dimension_numbers = #tpu.dot_dimension_numbers<[1], [0], [0], [1], [0, 0, 1, 1], [], []>} : vector<4x4xf32>, vector<4x256xf32>, vector<4x256xf32> -> vector<4x256xf32>
    %c0_4 = arith.constant 0 : index
    %c0_5 = arith.constant 0 : index
    %4 = vector.load %arg4[%c0_4, %c0_5] : memref<4x1xf32, #tpu.memory_space<vmem>>, vector<4x1xf32>
    %5 = vector.broadcast %4 : vector<4x1xf32> to vector<4x256xf32>
    %6 = arith.addf %3, %5 : vector<4x256xf32>
    %cst_6 = arith.constant 0.000000e+00 : f32
    %7 = vector.broadcast %cst_6 : f32 to vector<4x256xf32>
    %8 = arith.maximumf %6, %7 : vector<4x256xf32>
    %c0_7 = arith.constant 0 : index
    %c0_8 = arith.constant 0 : index
    %c0_9 = arith.constant 0 : index
    %9 = vector.load %arg5[%c0_7, %c0_8, %c0_9] : memref<1x4x256xf32, #tpu.memory_space<vmem>>, vector<1x4x256xf32>
    %10 = vector.shape_cast %9 : vector<1x4x256xf32> to vector<4x256xf32>
    %11 = vector.shape_cast %8 : vector<4x256xf32> to vector<1x4x256xf32>
    tpu.vector_store %arg5[%c0_7, %c0_8, %c0_9], %11 {strides = array<i32>} : memref<1x4x256xf32, #tpu.memory_space<vmem>>, vector<1x4x256xf32>,
    %12 = arith.truncf %8 : vector<4x256xf32> to vector<4x256xbf16>
    %c0_10 = arith.constant 0 : index
    %c0_11 = arith.constant 0 : index
    %c0_12 = arith.constant 0 : index
    %13 = vector.load %arg6[%c0_10, %c0_11, %c0_12] : memref<1x4x256xbf16, #tpu.memory_space<vmem>>, vector<1x4x256xbf16>
    %14 = vector.shape_cast %13 : vector<1x4x256xbf16> to vector<4x256xbf16>
    %15 = vector.shape_cast %12 : vector<4x256xbf16> to vector<1x4x256xbf16>
    tpu.vector_store %arg6[%c0_10, %c0_11, %c0_12], %15 {strides = array<i32>} : memref<1x4x256xbf16, #tpu.memory_space<vmem>>, vector<1x4x256xbf16>,
    return
  }
  func.func @transform_0(%arg0: i32, %arg1: i32) -> (i32, i32, i32) {
    %c0_i32 = arith.constant 0 : i32
    %c0_i32_0 = arith.constant 0 : i32
    return %arg0, %c0_i32, %arg1 : i32, i32, i32
  }
  func.func @transform_1(%arg0: i32, %arg1: i32) -> (i32, i32) {
    %c0_i32 = arith.constant 0 : i32
    %c0_i32_0 = arith.constant 0 : i32
    %c0_i32_1 = arith.constant 0 : i32
    return %c0_i32, %c0_i32_0 : i32, i32
  }
  func.func @transform_2(%arg0: i32, %arg1: i32) -> (i32, i32) {
    %c0_i32 = arith.constant 0 : i32
    %c0_i32_0 = arith.constant 0 : i32
    %c0_i32_1 = arith.constant 0 : i32
    return %c0_i32, %c0_i32_0 : i32, i32
  }
  func.func @transform_3(%arg0: i32, %arg1: i32) -> (i32, i32, i32) {
    %c0_i32 = arith.constant 0 : i32
    %c0_i32_0 = arith.constant 0 : i32
    return %arg0, %c0_i32, %arg1 : i32, i32, i32
  }
  func.func @transform_4(%arg0: i32, %arg1: i32) -> (i32, i32, i32) {
    %c0_i32 = arith.constant 0 : i32
    %c0_i32_0 = arith.constant 0 : i32
    return %arg0, %c0_i32, %arg1 : i32, i32, i32
  }
}

module attributes {stable_mosaic.version = 11 : i64} {
  func.func @_fused_conv1x1_kernel(%arg0: i32, %arg1: i32, %arg2: memref<1x8x256xf32, #tpu.memory_space<vmem>>, %arg3: memref<8x8xf32, #tpu.memory_space<vmem>>, %arg4: memref<8x1xf32, #tpu.memory_space<vmem>>, %arg5: memref<1x8x256xf32, #tpu.memory_space<vmem>>) attributes {dimension_semantics = [#tpu.dimension_semantics<parallel>, #tpu.dimension_semantics<parallel>], iteration_bounds = array<i64: 2, 1>, scalar_prefetch = 0 : i64, scratch_operands = 0 : i64, tpu.core_type = #tpu.core_type<tc>, window_params = [{transform_indices = @transform_0, window_bounds = array<i64: 1, 8, 256>}, {pipeline_mode = #tpu.pipeline_mode<synchronous>, transform_indices = @transform_1, window_bounds = array<i64: 8, 8>}, {pipeline_mode = #tpu.pipeline_mode<synchronous>, transform_indices = @transform_2, window_bounds = array<i64: 8, 1>}, {transform_indices = @transform_3, window_bounds = array<i64: 1, 8, 256>}]} {
    %c0 = arith.constant 0 : index
    %c0_0 = arith.constant 0 : index
    %c0_1 = arith.constant 0 : index
    %0 = vector.load %arg2[%c0, %c0_0, %c0_1] : memref<1x8x256xf32, #tpu.memory_space<vmem>>, vector<1x8x256xf32>
    %1 = vector.shape_cast %0 : vector<1x8x256xf32> to vector<8x256xf32>
    %c0_2 = arith.constant 0 : index
    %c0_3 = arith.constant 0 : index
    %2 = vector.load %arg3[%c0_2, %c0_3] : memref<8x8xf32, #tpu.memory_space<vmem>>, vector<8x8xf32>
    %cst = arith.constant dense<0.000000e+00> : vector<8x256xf32>
    %3 = tpu.matmul %2, %1, %cst {dimension_numbers = #tpu.dot_dimension_numbers<[1], [0], [0], [1], [0, 0, 1, 1], [], []>} : vector<8x8xf32>, vector<8x256xf32>, vector<8x256xf32> -> vector<8x256xf32>
    %c0_4 = arith.constant 0 : index
    %c0_5 = arith.constant 0 : index
    %4 = vector.load %arg4[%c0_4, %c0_5] : memref<8x1xf32, #tpu.memory_space<vmem>>, vector<8x1xf32>
    %5 = vector.broadcast %4 : vector<8x1xf32> to vector<8x256xf32>
    %6 = arith.addf %3, %5 : vector<8x256xf32>
    %cst_6 = arith.constant 0.000000e+00 : f32
    %7 = vector.broadcast %cst_6 : f32 to vector<8x256xf32>
    %8 = arith.maximumf %6, %7 : vector<8x256xf32>
    %c0_7 = arith.constant 0 : index
    %c0_8 = arith.constant 0 : index
    %c0_9 = arith.constant 0 : index
    %9 = vector.load %arg5[%c0_7, %c0_8, %c0_9] : memref<1x8x256xf32, #tpu.memory_space<vmem>>, vector<1x8x256xf32>
    %10 = vector.shape_cast %9 : vector<1x8x256xf32> to vector<8x256xf32>
    %11 = vector.shape_cast %8 : vector<8x256xf32> to vector<1x8x256xf32>
    tpu.vector_store %arg5[%c0_7, %c0_8, %c0_9], %11 {strides = array<i32>} : memref<1x8x256xf32, #tpu.memory_space<vmem>>, vector<1x8x256xf32>,
    return
  }
  func.func @transform_0(%arg0: i32, %arg1: i32) -> (i32, i32, i32) {
    %c0_i32 = arith.constant 0 : i32
    %c0_i32_0 = arith.constant 0 : i32
    return %arg0, %c0_i32, %arg1 : i32, i32, i32
  }
  func.func @transform_1(%arg0: i32, %arg1: i32) -> (i32, i32) {
    %c0_i32 = arith.constant 0 : i32
    %c0_i32_0 = arith.constant 0 : i32
    %c0_i32_1 = arith.constant 0 : i32
    return %c0_i32, %c0_i32_0 : i32, i32
  }
  func.func @transform_2(%arg0: i32, %arg1: i32) -> (i32, i32) {
    %c0_i32 = arith.constant 0 : i32
    %c0_i32_0 = arith.constant 0 : i32
    %c0_i32_1 = arith.constant 0 : i32
    return %c0_i32, %c0_i32_0 : i32, i32
  }
  func.func @transform_3(%arg0: i32, %arg1: i32) -> (i32, i32, i32) {
    %c0_i32 = arith.constant 0 : i32
    %c0_i32_0 = arith.constant 0 : i32
    return %arg0, %c0_i32, %arg1 : i32, i32, i32
  }
}

module attributes {stable_mosaic.version = 11 : i64} {
  func.func @_fused_conv1x1_kernel(%arg0: i32, %arg1: i32, %arg2: memref<1x4x256xbf16, #tpu.memory_space<vmem>>, %arg3: memref<1x4x256xf32, #tpu.memory_space<vmem>>, %arg4: memref<8x4xf32, #tpu.memory_space<vmem>>, %arg5: memref<1x8x256xf32, #tpu.memory_space<vmem>>) attributes {dimension_semantics = [#tpu.dimension_semantics<parallel>, #tpu.dimension_semantics<parallel>], iteration_bounds = array<i64: 2, 1>, scalar_prefetch = 0 : i64, scratch_operands = 0 : i64, tpu.core_type = #tpu.core_type<tc>, window_params = [{transform_indices = @transform_0, window_bounds = array<i64: 1, 4, 256>}, {transform_indices = @transform_1, window_bounds = array<i64: 1, 4, 256>}, {pipeline_mode = #tpu.pipeline_mode<synchronous>, transform_indices = @transform_2, window_bounds = array<i64: 8, 4>}, {transform_indices = @transform_3, window_bounds = array<i64: 1, 8, 256>}]} {
    %c0 = arith.constant 0 : index
    %c0_0 = arith.constant 0 : index
    %c0_1 = arith.constant 0 : index
    %0 = vector.load %arg2[%c0, %c0_0, %c0_1] : memref<1x4x256xbf16, #tpu.memory_space<vmem>>, vector<1x4x256xbf16>
    %1 = vector.shape_cast %0 : vector<1x4x256xbf16> to vector<4x256xbf16>
    %2 = arith.extf %1 : vector<4x256xbf16> to vector<4x256xf32>
    %c0_2 = arith.constant 0 : index
    %c0_3 = arith.constant 0 : index
    %c0_4 = arith.constant 0 : index
    %3 = vector.load %arg3[%c0_2, %c0_3, %c0_4] : memref<1x4x256xf32, #tpu.memory_space<vmem>>, vector<1x4x256xf32>
    %4 = vector.shape_cast %3 : vector<1x4x256xf32> to vector<4x256xf32>
    %5 = arith.addf %2, %4 : vector<4x256xf32>
    %c0_5 = arith.constant 0 : index
    %c0_6 = arith.constant 0 : index
    %6 = vector.load %arg4[%c0_5, %c0_6] : memref<8x4xf32, #tpu.memory_space<vmem>>, vector<8x4xf32>
    %cst = arith.constant dense<0.000000e+00> : vector<8x256xf32>
    %7 = tpu.matmul %6, %5, %cst {dimension_numbers = #tpu.dot_dimension_numbers<[1], [0], [0], [1], [0, 0, 1, 1], [], []>} : vector<8x4xf32>, vector<4x256xf32>, vector<8x256xf32> -> vector<8x256xf32>
    %c0_7 = arith.constant 0 : index
    %c0_8 = arith.constant 0 : index
    %c0_9 = arith.constant 0 : index
    %8 = vector.load %arg5[%c0_7, %c0_8, %c0_9] : memref<1x8x256xf32, #tpu.memory_space<vmem>>, vector<1x8x256xf32>
    %9 = vector.shape_cast %8 : vector<1x8x256xf32> to vector<8x256xf32>
    %10 = vector.shape_cast %7 : vector<8x256xf32> to vector<1x8x256xf32>
    tpu.vector_store %arg5[%c0_7, %c0_8, %c0_9], %10 {strides = array<i32>} : memref<1x8x256xf32, #tpu.memory_space<vmem>>, vector<1x8x256xf32>,
    return
  }
  func.func @transform_0(%arg0: i32, %arg1: i32) -> (i32, i32, i32) {
    %c0_i32 = arith.constant 0 : i32
    %c0_i32_0 = arith.constant 0 : i32
    return %arg0, %c0_i32, %arg1 : i32, i32, i32
  }
  func.func @transform_1(%arg0: i32, %arg1: i32) -> (i32, i32, i32) {
    %c0_i32 = arith.constant 0 : i32
    %c0_i32_0 = arith.constant 0 : i32
    return %arg0, %c0_i32, %arg1 : i32, i32, i32
  }
  func.func @transform_2(%arg0: i32, %arg1: i32) -> (i32, i32) {
    %c0_i32 = arith.constant 0 : i32
    %c0_i32_0 = arith.constant 0 : i32
    %c0_i32_1 = arith.constant 0 : i32
    return %c0_i32, %c0_i32_0 : i32, i32
  }
  func.func @transform_3(%arg0: i32, %arg1: i32) -> (i32, i32, i32) {
    %c0_i32 = arith.constant 0 : i32
    %c0_i32_0 = arith.constant 0 : i32
    return %arg0, %c0_i32, %arg1 : i32, i32, i32
  }
}

</mosaic_0001>

<llo_original>
// kernel: spectral_transform_forward.3
$region0: #{spectral_transform_forward.3}
  #allocation0 [shape = 'u32[]', space=smem, size = 0x4, offset = 0x4, fixed_abs, tag = 'smem constant byte address 0x4 - core index']
  #allocation1 [shape = 'u32[144,128]{1,0:T(1,128)}', space=vmem, size = 0x12000, scoped, tag = 'internal scratch']
  %s0 = inlined_call_operand.vmem [shape: f32[2,4,256], index: 0, kind: input, shape index: {}]
  %s1 = inlined_call_operand.vmem [shape: f32[4,4], index: 1, kind: input, shape index: {}]
  %s2 = inlined_call_operand.vmem [shape: f32[4,1], index: 2, kind: input, shape index: {}]
  %s3 = inlined_call_operand.vmem [shape: f32[2,4,256], index: 3, kind: output, shape index: {0}]
  %s4 = inlined_call_operand.vmem [shape: bf16[2,4,256], index: 4, kind: output, shape index: {1}]
  %5 = xla_tuple %s3, %s4
  %s6 = sld [smem:[#allocation0]]
  $region53: #{spectral_transform_forward.3} parent=0
    _
  %s8 = ssub.s32 1, %s6
  %s9 = scalar_select 0, %s8, %s6
  loop: start=0, step=1, limit=4
  $region2: #{spectral_transform_forward.3} parent=0 // loop_pre_header
    _
  $region3: #{spectral_transform_forward.3} parent=0 // loop_header
    %s11 = sphi 0, %s15
    %p12 = scmp.ge.s32.totalorder %s11, 4
    %s18 = sphi 0, %s30
    %s19 = sphi 0, %s26
    %s20 = sphi 0, %s18
    %s21 = sphi 0, %s19
    %s22 = sphi 0, %s20
    %s23 = sphi 0, %s21
    %s35 = sphi 0, %s37
    %s38 = sphi 0, %s35
    %s39 = sphi 0, %s38
    %s55 = sphi 0, %s39
    %s59 = sphi 0, %s59
    %s61 = sphi 0, %s59
    %s62 = sphi 0, %s61
    %s76 = sphi 0, %s62
    %s80 = sphi 0, %s80
    %s82 = sphi 0, %s80
    %s83 = sphi 0, %s82
    %s97 = sphi 0, %s83
    %s105 = sphi 0, %s107
    %s108 = sphi 0, %s105
    %s109 = sphi 0, %s108
    %s125 = sphi 0, %s109
    %s133 = sphi 0, %s135
    %s136 = sphi 0, %s133
    %s137 = sphi 0, %s136
    %s153 = sphi 0, %s137
  $region4: #{spectral_transform_forward.3} parent=0 // loop_header_branch
    %14 = sbr.rel (%p12) target = $region8
  $region5: #{spectral_transform_forward.3} parent=0 // loop_body
    %s16 = ssub.s32 %s11, 1
    %s17 = ssub.s32 %s11, 2
    %s24 = sadd.s32 1, %s19
    %p25 = scmp.ge.s32.totalorder %s24, 1
    %s26 = scalar_select %p25, 0, %s24
    %s27 = sadd.s32 1, %s18
    %s28 = scalar_select %p25, %s27, %s18
    %p29 = scmp.ge.s32.totalorder %s28, 2
    %s30 = scalar_select %p29, 0, %s28
    %s31 = ssub.s32 %s18, %s30
    %s32 = ssub.s32 %s19, %s26
    %s33 = sor.u32 %s31, %s32
    %p34 = scmp.eq.s32.totalorder %s33, 0
    %s36 = sadd.s32 %s35, 1
    %s37 = scalar_select %p34, %s35, %s36
    %p40 = pneg %p34
    %p41 = scmp.eq.s32.totalorder %s11, 1
    %p42 = por %p40, %p41
    %p43 = scmp.ne.s32.totalorder %s35, %s38
    %p44 = scmp.eq.s32.totalorder %s11, 0
    %p45 = por %p43, %p44
    %p46 = scmp.ne.s32.totalorder %s35, %s38
    %p47 = scmp.eq.s32.totalorder %s16, 1
    %p48 = por %p46, %p47
    %p49 = scmp.ne.s32.totalorder %s38, %s39
    %p50 = scmp.eq.s32.totalorder %s16, 0
    %p51 = por %p49, %p50
    %p52 = scmp.ne.s32.totalorder %s38, %s39
    %p53 = scmp.eq.s32.totalorder %s17, 1
    %p54 = por %p52, %p53
    %p56 = scmp.ne.s32.totalorder %s39, %s55
    %p57 = scmp.eq.s32.totalorder %s17, 0
    %p58 = por %p56, %p57
    %s60 = sadd.s32 %s59, 1
    %p63 = scmp.eq.s32.totalorder %s11, 1
    %p64 = scmp.ne.s32.totalorder %s59, %s61
    %p65 = scmp.eq.s32.totalorder %s11, 0
    %p66 = por %p64, %p65
    %p67 = scmp.ne.s32.totalorder %s59, %s61
    %p68 = scmp.eq.s32.totalorder %s16, 1
    %p69 = por %p67, %p68
    %p70 = scmp.ne.s32.totalorder %s61, %s62
    %p71 = scmp.eq.s32.totalorder %s16, 0
    %p72 = por %p70, %p71
    %p73 = scmp.ne.s32.totalorder %s61, %s62
    %p74 = scmp.eq.s32.totalorder %s17, 1
    %p75 = por %p73, %p74
    %p77 = scmp.ne.s32.totalorder %s62, %s76
    %p78 = scmp.eq.s32.totalorder %s17, 0
    %p79 = por %p77, %p78
    %s81 = sadd.s32 %s80, 1
    %p84 = scmp.eq.s32.totalorder %s11, 1
    %p85 = scmp.ne.s32.totalorder %s80, %s82
    %p86 = scmp.eq.s32.totalorder %s11, 0
    %p87 = por %p85, %p86
    %p88 = scmp.ne.s32.totalorder %s80, %s82
    %p89 = scmp.eq.s32.totalorder %s16, 1
    %p90 = por %p88, %p89
    %p91 = scmp.ne.s32.totalorder %s82, %s83
    %p92 = scmp.eq.s32.totalorder %s16, 0
    %p93 = por %p91, %p92
    %p94 = scmp.ne.s32.totalorder %s82, %s83
    %p95 = scmp.eq.s32.totalorder %s17, 1
    %p96 = por %p94, %p95
    %p98 = scmp.ne.s32.totalorder %s83, %s97
    %p99 = scmp.eq.s32.totalorder %s17, 0
    %p100 = por %p98, %p99
    %s101 = ssub.s32 %s18, %s30
    %s102 = ssub.s32 %s19, %s26
    %s103 = sor.u32 %s101, %s102
    %p104 = scmp.eq.s32.totalorder %s103, 0
    %s106 = sadd.s32 %s105, 1
    %s107 = scalar_select %p104, %s105, %s106
    %p110 = pneg %p104
    %p111 = scmp.eq.s32.totalorder %s11, 1
    %p112 = por %p110, %p111
    %p113 = scmp.ne.s32.totalorder %s105, %s108
    %p114 = scmp.eq.s32.totalorder %s11, 0
    %p115 = por %p113, %p114
    %p116 = scmp.ne.s32.totalorder %s105, %s108
    %p117 = scmp.eq.s32.totalorder %s16, 1
    %p118 = por %p116, %p117
    %p119 = scmp.ne.s32.totalorder %s108, %s109
    %p120 = scmp.eq.s32.totalorder %s16, 0
    %p121 = por %p119, %p120
    %p122 = scmp.ne.s32.totalorder %s108, %s109
    %p123 = scmp.eq.s32.totalorder %s17, 1
    %p124 = por %p122, %p123
    %p126 = scmp.ne.s32.totalorder %s109, %s125
    %p127 = scmp.eq.s32.totalorder %s17, 0
    %p128 = por %p126, %p127
    %s129 = ssub.s32 %s18, %s30
    %s130 = ssub.s32 %s19, %s26
    %s131 = sor.u32 %s129, %s130
    %p132 = scmp.eq.s32.totalorder %s131, 0
    %s134 = sadd.s32 %s133, 1
    %s135 = scalar_select %p132, %s133, %s134
    %p138 = pneg %p132
    %p139 = scmp.eq.s32.totalorder %s11, 1
    %p140 = por %p138, %p139
    %p141 = scmp.ne.s32.totalorder %s133, %s136
    %p142 = scmp.eq.s32.totalorder %s11, 0
    %p143 = por %p141, %p142
    %p144 = scmp.ne.s32.totalorder %s133, %s136
    %p145 = scmp.eq.s32.totalorder %s16, 1
    %p146 = por %p144, %p145
    %p147 = scmp.ne.s32.totalorder %s136, %s137
    %p148 = scmp.eq.s32.totalorder %s16, 0
    %p149 = por %p147, %p148
    %p150 = scmp.ne.s32.totalorder %s136, %s137
    %p151 = scmp.eq.s32.totalorder %s17, 1
    %p152 = por %p150, %p151
    %p154 = scmp.ne.s32.totalorder %s137, %s153
    %p155 = scmp.eq.s32.totalorder %s17, 0
    %p156 = por %p154, %p155
    %p157 = scmp.le.s32.totalorder 1, %s11
    %p158 = scmp.lt.s32.totalorder %s11, 3
    %p159 = pnand %p157, %p158
    %p160 = pneg %p159
    // Predicated region
    $region9: #{spectral_transform_forward.3} parent=5 // pred_check
      _
    $region10: #{spectral_transform_forward.3} parent=5 // pred_check_branch
      %162 = sbr.rel (%p159) target = $region12
    $region11: #{spectral_transform_forward.3} parent=5 // pred_region
      %s163 = ssub.s32 %s11, 1
      // Predicated region
      $region13: #{spectral_transform_forward.3} parent=11 // pred_check
        %p164 = pneg %p72
      $region14: #{spectral_transform_forward.3} parent=11 // pred_check_branch
        %166 = sbr.rel (%p164) target = $region16
      $region15: #{spectral_transform_forward.3} parent=11 // pred_region
        _
      $region16: #{spectral_transform_forward.3} parent=11 // pred_fallthru
        _
      // Predicated region
      $region17: #{spectral_transform_forward.3} parent=11 // pred_check
        %p167 = pneg %p93
      $region18: #{spectral_transform_forward.3} parent=11 // pred_check_branch
        %169 = sbr.rel (%p167) target = $region20
      $region19: #{spectral_transform_forward.3} parent=11 // pred_region
        _
      $region20: #{spectral_transform_forward.3} parent=11 // pred_fallthru
        _
    $region12: #{spectral_transform_forward.3} parent=5 // pred_fallthru
      _
    %p170 = scmp.lt.s32.totalorder %s11, 2
    // Predicated region
    $region21: #{spectral_transform_forward.3} parent=5 // pred_check
      %p171 = pneg %p170
    $region22: #{spectral_transform_forward.3} parent=5 // pred_check_branch
      %173 = sbr.rel (%p171) target = $region24
    $region23: #{spectral_transform_forward.3} parent=5 // pred_region
      // Predicated region
      $region25: #{spectral_transform_forward.3} parent=23 // pred_check
        %p174 = pneg %p45
      $region26: #{spectral_transform_forward.3} parent=23 // pred_check_branch
        %176 = sbr.rel (%p174) target = $region28
      $region27: #{spectral_transform_forward.3} parent=23 // pred_region
        %s177 = smul.u32 2, %s19
        %p178 = scmp.lt.s32.totalorder %s18, 1
        %s179 = scalar_select %p178, %s18, 1
        %p180 = scmp.lt.s32.totalorder %s177, 1
        %s181 = scalar_select %p180, %s177, 1
        %s182 = smul.addr %s179, 2
        %s183 = sadd.s32 %s181, %s182
        %s184 = smul.addr %s183, 4
        %s185 = scalar_lea.vmem %s0, %s184
        %s186 = smul.u32 2, %s19
      $region28: #{spectral_transform_forward.3} parent=23 // pred_fallthru
        _
    $region24: #{spectral_transform_forward.3} parent=5 // pred_fallthru
      _
    %p187 = scmp.le.s32.totalorder 1, %s11
    %p188 = scmp.lt.s32.totalorder %s11, 3
    %p189 = pnand %p187, %p188
    %p190 = pneg %p189
    // Predicated region
    $region29: #{spectral_transform_forward.3} parent=5 // pred_check
      _
    $region30: #{spectral_transform_forward.3} parent=5 // pred_check_branch
      %192 = sbr.rel (%p189) target = $region32
    $region31: #{spectral_transform_forward.3} parent=5 // pred_region
      %s193 = ssub.s32 %s11, 1
      %s194 = smul.u32 2, %s21
      %p195 = scmp.lt.s32.totalorder %s20, 1
      %s196 = scalar_select %p195, %s20, 1
      %p197 = scmp.lt.s32.totalorder %s194, 1
      %s198 = scalar_select %p197, %s194, 1
      %s199 = smul.addr %s196, 2
      %s200 = sadd.s32 %s198, %s199
      %s201 = smul.addr %s200, 4
      %s202 = scalar_lea.vmem %s0, %s201
      %p203 = pneg %p51
      %p204 = pneg %p48
      %p205 = pneg %p72
      %p206 = pneg %p69
      %p207 = pneg %p93
      %p208 = pneg %p90
      %p209 = pneg %p121
      %p210 = pneg %p118
      %s211 = smul.u32 2, %s21
      %p212 = scmp.lt.s32.totalorder %s20, 1
      %s213 = scalar_select %p212, %s20, 1
      %p214 = scmp.lt.s32.totalorder %s211, 1
      %s215 = scalar_select %p214, %s211, 1
      %s216 = smul.addr %s213, 2
      %s217 = sadd.s32 %s215, %s216
      %s218 = smul.addr %s217, 4
      %s219 = scalar_lea.vmem %s3, %s218
      %p220 = pneg %p149
      %p221 = pneg %p146
      %s222 = smul.u32 2, %s21
      %p223 = scmp.lt.s32.totalorder %s20, 1
      %s224 = scalar_select %p223, %s20, 1
      %p225 = scmp.lt.s32.totalorder %s222, 1
      %s226 = scalar_select %p225, %s222, 1
      %s227 = smul.addr %s224, 2
      %s228 = sadd.s32 %s226, %s227
      %s229 = smul.addr %s228, 2
      %s230 = scalar_lea.vmem %s4, %s229
      %s231 = smul.u32 2, %s21
      %p232 = scmp.lt.s32.totalorder %s20, 1
      %s233 = scalar_select %p232, %s20, 1
      %p234 = scmp.lt.s32.totalorder %s231, 1
      %s235 = scalar_select %p234, %s231, 1
      %s236 = smul.addr %s233, 2
      %s237 = sadd.s32 %s235, %s236
      %s238 = smul.addr %s237, 4
      %s239 = scalar_lea.vmem %s0, %s238
      %s240 = smul.u32 2, %s21
      %s241 = smul.u32 2, %s21
      %p242 = scmp.lt.s32.totalorder %s20, 1
      %s243 = scalar_select %p242, %s20, 1
      %p244 = scmp.lt.s32.totalorder %s241, 1
      %s245 = scalar_select %p244, %s241, 1
      %s246 = smul.addr %s243, 2
      %s247 = sadd.s32 %s245, %s246
      %s248 = smul.addr %s247, 4
      %s249 = scalar_lea.vmem %s3, %s248
      %s250 = smul.u32 2, %s21
      %s251 = smul.u32 2, %s21
      %p252 = scmp.lt.s32.totalorder %s20, 1
      %s253 = scalar_select %p252, %s20, 1
      %p254 = scmp.lt.s32.totalorder %s251, 1
      %s255 = scalar_select %p254, %s251, 1
      %s256 = smul.addr %s253, 2
      %s257 = sadd.s32 %s255, %s256
      %s258 = smul.addr %s257, 2
      %s259 = scalar_lea.vmem %s4, %s258
      %s260 = smul.u32 2, %s21
      %v261 = vld [vmem:[%s239] sm:$0xff]
      %v262 = vld [vmem:[%s1] sm:$0xf]
      %v263 = vld [vmem:[%s2] sm:$0xf]
      %265 = vset.pattern.permute.xlu0 0
      %266 = vperm.xlu0 %265, %v263
      %v267 = vpop.permute.xlu0 %266
      %v270 = vcombine.high %v261, %v261
      %vm271 = vcmask 31744
      %v273 = vsel %vm271, %v262, 0
      %vm275 = vcmask 1043456
      %v276 = vsel %vm275, %v261, 0
      %v278 = vsel %vm275, %v270, 0
      %280 = vmatprep.subr.mxu0 %v278
      %281 = vmatpush1.msra.mxu0 %v276
      %282 = vmatprep.subr.mxu0 0.0
      %283 = vmatpush1.msra.mxu0 0.0
      %284 = vmatprep.subr.mxu0 0.0
      %285 = vmatpush1.msra.mxu0 0.0
      %286 = vmatprep.subr.mxu0 0.0
      %287 = vmatpush1.msra.mxu0 0.0
      %288 = vmatprep.subr.mxu0 0.0
      %289 = vmatpush1.msra.mxu0 0.0
      %290 = vmatprep.subr.mxu0 0.0
      %291 = vmatpush1.msra.mxu0 0.0
      %292 = vmatprep.subr.mxu0 0.0
      %293 = vmatpush1.msra.mxu0 0.0
      %294 = vmatprep.subr.mxu0 0.0
      %295 = vmatpush1.msra.mxu0 0.0
      %296 = vmatprep.subr.mxu0 0.0
      %297 = vmatpush1.msra.mxu0 0.0
      %298 = vmatprep.subr.mxu0 0.0
      %299 = vmatpush1.msra.mxu0 0.0
      %300 = vmatprep.subr.mxu0 0.0
      %301 = vmatpush1.msra.mxu0 0.0
      %302 = vmatprep.subr.mxu0 0.0
      %303 = vmatpush1.msra.mxu0 0.0
      %304 = vmatprep.subr.mxu0 0.0
      %305 = vmatpush1.msra.mxu0 0.0
      %306 = vmatprep.subr.mxu0 0.0
      %307 = vmatpush1.msra.mxu0 0.0
      %308 = vmatprep.subr.mxu0 0.0
      %309 = vmatpush1.msra.mxu0 0.0
      %310 = vmatprep.subr.mxu0 0.0
      %311 = vmatpush1.msra.mxu0 0.0
      %312 = vmatprep.subr.mxu0 0.0
      %313 = vmatpush1.msra.mxu0 0.0
      %314 = vmatprep.subr.mxu0 0.0
      %315 = vmatpush1.msra.mxu0 0.0
      %316 = vmatprep.subr.mxu0 0.0
      %317 = vmatpush1.msra.mxu0 0.0
      %318 = vmatprep.subr.mxu0 0.0
      %319 = vmatpush1.msra.mxu0 0.0
      %320 = vmatprep.subr.mxu0 0.0
      %321 = vmatpush1.msra.mxu0 0.0
      %322 = vmatprep.subr.mxu0 0.0
      %323 = vmatpush1.msra.mxu0 0.0
      %324 = vmatprep.subr.mxu0 0.0
      %325 = vmatpush1.msra.mxu0 0.0
      %326 = vmatprep.subr.mxu0 0.0
      %327 = vmatpush1.msra.mxu0 0.0
      %328 = vmatprep.subr.mxu0 0.0
      %329 = vmatpush1.msra.mxu0 0.0
      %330 = vmatprep.subr.mxu0 0.0
      %331 = vmatpush1.msra.mxu0 0.0
      %332 = vmatprep.subr.mxu0 0.0
      %333 = vmatpush1.msra.mxu0 0.0
      %334 = vmatprep.subr.mxu0 0.0
      %335 = vmatpush1.msra.mxu0 0.0
      %336 = vmatprep.subr.mxu0 0.0
      %337 = vmatpush1.msra.mxu0 0.0
      %338 = vmatprep.subr.mxu0 0.0
      %339 = vmatpush1.msra.mxu0 0.0
      %340 = vmatprep.subr.mxu0 0.0
      %341 = vmatpush1.msra.mxu0 0.0
      %342 = vmatprep.subr.mxu0 0.0
      %343 = vmatpush1.msra.mxu0 0.0
      %344 = vmatprep.mubr.f32.mxu0 0.0
      %345 = vmatmul.mubr.f32.gmra.mrb[0].mxu0 %v273
      %v346 = vpop.f32.mrb[0].mxu0
      %v347 = vadd.f32 %v267, %v346
      %v348 = vpop.f32.mrb[0].mxu0
      %v349 = vadd.f32 %v267, %v348
      %350 = vdwg.mxu0
      %v351 = vmax.f32 %v347, 0.0
      %v352 = vmax.f32 %v349, 0.0
      %v355 = vcombine.low %v351, %v352
      %357 = vst [vmem:[%s249] sm:$0xff] %v355
      %v358 = vpack.c.bf16 %v351, %v351
      %v359 = vpack.c.bf16 %v352, %v352
      %v362 = vcombine.low %v358, %v359
      %v364 = vunpack.c.l.s4 1983009808
      %v365 = vunpack.c.0.s8 %v364
      %v366 = vlaneseq
      %v367 = vshrl.u32 %v366, 7
      %v368 = vsub.s32 %v365, %v367
      %v369 = vrot.slane %v362, %v368
      %371 = vst [vmem:[%s259] sm:$0xf] %v369
      %s372 = smul.u32 2, %s21
      %p373 = scmp.lt.s32.totalorder %s20, 1
      %s374 = scalar_select %p373, %s20, 1
      %p375 = scmp.lt.s32.totalorder %s372, 1
      %s376 = scalar_select %p375, %s372, 1
      %s377 = smul.addr %s374, 2
      %s378 = sadd.s32 %s376, %s377
      %s379 = smul.addr %s378, 4
      %s380 = scalar_lea.vmem %s3, %s379
      %s381 = smul.u32 2, %s21
      %p382 = scmp.lt.s32.totalorder %s20, 1
      %s383 = scalar_select %p382, %s20, 1
      %p384 = scmp.lt.s32.totalorder %s381, 1
      %s385 = scalar_select %p384, %s381, 1
      %s386 = smul.addr %s383, 2
      %s387 = sadd.s32 %s385, %s386
      %s388 = smul.addr %s387, 2
      %s389 = scalar_lea.vmem %s4, %s388
      // Predicated region
      $region33: #{spectral_transform_forward.3} parent=31 // pred_check
        %p390 = pneg %p118
      $region34: #{spectral_transform_forward.3} parent=31 // pred_check_branch
        %392 = sbr.rel (%p390) target = $region36
      $region35: #{spectral_transform_forward.3} parent=31 // pred_region
        %s393 = smul.u32 2, %s21
      $region36: #{spectral_transform_forward.3} parent=31 // pred_fallthru
        _
      // Predicated region
      $region37: #{spectral_transform_forward.3} parent=31 // pred_check
        %p394 = pneg %p146
      $region38: #{spectral_transform_forward.3} parent=31 // pred_check_branch
        %396 = sbr.rel (%p394) target = $region40
      $region39: #{spectral_transform_forward.3} parent=31 // pred_region
        %s397 = smul.u32 2, %s21
      $region40: #{spectral_transform_forward.3} parent=31 // pred_fallthru
        _
    $region32: #{spectral_transform_forward.3} parent=5 // pred_fallthru
      _
    %p398 = scmp.le.s32.totalorder 2, %s11
    // Predicated region
    $region41: #{spectral_transform_forward.3} parent=5 // pred_check
      %p399 = pneg %p398
    $region42: #{spectral_transform_forward.3} parent=5 // pred_check_branch
      %401 = sbr.rel (%p399) target = $region44
    $region43: #{spectral_transform_forward.3} parent=5 // pred_region
      %s402 = ssub.s32 %s11, 2
      // Predicated region
      $region45: #{spectral_transform_forward.3} parent=43 // pred_check
        %p403 = pneg %p124
      $region46: #{spectral_transform_forward.3} parent=43 // pred_check_branch
        %405 = sbr.rel (%p403) target = $region48
      $region47: #{spectral_transform_forward.3} parent=43 // pred_region
        %s406 = smul.u32 2, %s23
        %p407 = scmp.lt.s32.totalorder %s22, 1
        %s408 = scalar_select %p407, %s22, 1
        %p409 = scmp.lt.s32.totalorder %s406, 1
        %s410 = scalar_select %p409, %s406, 1
        %s411 = smul.addr %s408, 2
        %s412 = sadd.s32 %s410, %s411
        %s413 = smul.addr %s412, 4
        %s414 = scalar_lea.vmem %s3, %s413
      $region48: #{spectral_transform_forward.3} parent=43 // pred_fallthru
        _
      // Predicated region
      $region49: #{spectral_transform_forward.3} parent=43 // pred_check
        %p415 = pneg %p152
      $region50: #{spectral_transform_forward.3} parent=43 // pred_check_branch
        %417 = sbr.rel (%p415) target = $region52
      $region51: #{spectral_transform_forward.3} parent=43 // pred_region
        %s418 = smul.u32 2, %s23
        %p419 = scmp.lt.s32.totalorder %s22, 1
        %s420 = scalar_select %p419, %s22, 1
        %p421 = scmp.lt.s32.totalorder %s418, 1
        %s422 = scalar_select %p421, %s418, 1
        %s423 = smul.addr %s420, 2
        %s424 = sadd.s32 %s422, %s423
        %s425 = smul.addr %s424, 2
        %s426 = scalar_lea.vmem %s4, %s425
      $region52: #{spectral_transform_forward.3} parent=43 // pred_fallthru
        _
    $region44: #{spectral_transform_forward.3} parent=5 // pred_fallthru
      _
  $region6: #{spectral_transform_forward.3} parent=0 // loop_footer
    %s15 = sadd.s32 1, %s11
  $region7: #{spectral_transform_forward.3} parent=0 // loop_footer_branch
    %10 = sbr.rel target = $region3
  $region8: #{spectral_transform_forward.3} parent=0 // loop_exit
    _

// kernel: reverse.0
$region0: #{reverse.0}
  %s0 = inlined_call_operand.vmem [shape: f32[2,4,16,7], index: 0, kind: input, shape index: {}]
  %s1 = inlined_call_operand.vmem [shape: f32[2,4,16,7], index: 1, kind: output, shape index: {}]
  $region1: #{reverse.0} parent=0
    #allocation0 [shape = 'u8[65536]{0}', space=vmem, size = 0x10000, scoped, tag = 'operand span for operand 0']
    #allocation1 [shape = 'u8[32768]{0}', space=vmem, size = 0x8000, scoped, tag = 'operand span for operand 1']
    %s2 = scalar_lea.vmem [#allocation0], 8
    // Predicated region
    $region2: #{reverse.0} parent=1 // pred_check
      _
    $region3: #{reverse.0} parent=1 // pred_check_branch
      %4 = sbr.rel (0) target = $region5
    $region4: #{reverse.0} parent=1 // pred_region
      // Predicated region
      $region6: #{reverse.0} parent=4 // pred_check
        _
      $region7: #{reverse.0} parent=4 // pred_check_branch
        %6 = sbr.rel (0) target = $region9
      $region8: #{reverse.0} parent=4 // pred_region
        // Predicated region
        $region21: #{reverse.0} parent=8 // pred_check
          _
        $region22: #{reverse.0} parent=8 // pred_check_branch
          %35 = sbr.rel (0) target = $region24
        $region23: #{reverse.0} parent=8 // pred_region
          loop: start=0, step=1, limit=1
          $region25: #{reverse.0} parent=23 // loop_pre_header
            _
          $region26: #{reverse.0} parent=23 // loop_header
            %s37 = sphi 0, %s41
            %p38 = scmp.ge.s32.totalorder %s37, 1
            %s42 = sphi %s0, %s0
            %s43 = sphi %s2, %s2
          $region27: #{reverse.0} parent=23 // loop_header_branch
            %40 = sbr.rel (%p38) target = $region31
          $region28: #{reverse.0} parent=23 // loop_body
            %v44 = vld [vmem:[%s42] sm:$0xff]
            %45 = vst [vmem:[%s43] sm:$0xff] %v44
            %v46 = vld [vmem:[%s42 + $0x8] sm:$0xff]
            %47 = vst [vmem:[%s43 + $0x10] sm:$0xff] %v46
            %v48 = vld [vmem:[%s42 + $0x10] sm:$0xff]
            %49 = vst [vmem:[%s43 + $0x20] sm:$0xff] %v48
            %v50 = vld [vmem:[%s42 + $0x18] sm:$0xff]
            %51 = vst [vmem:[%s43 + $0x30] sm:$0xff] %v50
            %v52 = vld [vmem:[%s42 + $0x20] sm:$0xff]
            %53 = vst [vmem:[%s43 + $0x40] sm:$0xff] %v52
            %v54 = vld [vmem:[%s42 + $0x28] sm:$0xff]
            %55 = vst [vmem:[%s43 + $0x50] sm:$0xff] %v54
            %v56 = vld [vmem:[%s42 + $0x30] sm:$0xff]
            %57 = vst [vmem:[%s43 + $0x60] sm:$0xff] %v56
            %v58 = vld [vmem:[%s42 + $0x38] sm:$0xff]
            %59 = vst [vmem:[%s43 + $0x70] sm:$0xff] %v58
          $region29: #{reverse.0} parent=23 // loop_footer
            %s41 = sadd.s32 1, %s37
          $region30: #{reverse.0} parent=23 // loop_footer_branch
            %36 = sbr.rel target = $region26
          $region31: #{reverse.0} parent=23 // loop_exit
            _
        $region24: #{reverse.0} parent=8 // pred_fallthru
          _
        // Predicated region
        $region32: #{reverse.0} parent=8 // pred_check
          _
        $region33: #{reverse.0} parent=8 // pred_check_branch
          %61 = sbr.rel target = $region35
        $region34: #{reverse.0} parent=8 // pred_region
          _
        $region35: #{reverse.0} parent=8 // pred_fallthru
          _
      $region9: #{reverse.0} parent=4 // pred_fallthru
        _
      // Predicated region
      $region10: #{reverse.0} parent=4 // pred_check
        _
      $region11: #{reverse.0} parent=4 // pred_check_branch
        %8 = sbr.rel target = $region13
      $region12: #{reverse.0} parent=4 // pred_region
        loop: start=0, step=1, limit=1
        $region14: #{reverse.0} parent=12 // loop_pre_header
          _
        $region15: #{reverse.0} parent=12 // loop_header
          %s11 = sphi 0, %s15
          %p12 = scmp.ge.s32.totalorder %s11, 1
          %s16 = sphi %s0, %s0
          %s17 = sphi %s2, %s2
        $region16: #{reverse.0} parent=12 // loop_header_branch
          %14 = sbr.rel (%p12) target = $region20
        $region17: #{reverse.0} parent=12 // loop_body
          %v18 = vld [vmem:[%s16] sm:$0xff]
          %19 = vst [vmem:[%s17] sm:$0xff] %v18
          %v20 = vld [vmem:[%s16 + $0x8] sm:$0xff]
          %21 = vst [vmem:[%s17 + $0x10] sm:$0xff] %v20
          %v22 = vld [vmem:[%s16 + $0x10] sm:$0xff]
          %23 = vst [vmem:[%s17 + $0x20] sm:$0xff] %v22
          %v24 = vld [vmem:[%s16 + $0x18] sm:$0xff]
          %25 = vst [vmem:[%s17 + $0x30] sm:$0xff] %v24
          %v26 = vld [vmem:[%s16 + $0x20] sm:$0xff]
          %27 = vst [vmem:[%s17 + $0x40] sm:$0xff] %v26
          %v28 = vld [vmem:[%s16 + $0x28] sm:$0xff]
          %29 = vst [vmem:[%s17 + $0x50] sm:$0xff] %v28
          %v30 = vld [vmem:[%s16 + $0x30] sm:$0xff]
          %31 = vst [vmem:[%s17 + $0x60] sm:$0xff] %v30
          %v32 = vld [vmem:[%s16 + $0x38] sm:$0xff]
          %33 = vst [vmem:[%s17 + $0x70] sm:$0xff] %v32
        $region18: #{reverse.0} parent=12 // loop_footer
          %s15 = sadd.s32 1, %s11
        $region19: #{reverse.0} parent=12 // loop_footer_branch
          %10 = sbr.rel target = $region15
        $region20: #{reverse.0} parent=12 // loop_exit
          _
      $region13: #{reverse.0} parent=4 // pred_fallthru
        _
    $region5: #{reverse.0} parent=1 // pred_fallthru
      _
    %62 = vnop
    %s63 = scalar_lea.vmem [#allocation0], 7
    %v64 = vld [vmem:[%s63] ss:$-1 sm:$0xff]
    %v65 = vrot.slane %v64, 1
    %66 = vst [vmem:[#allocation1] sm:$0xff] %v65
    %s67 = scalar_lea.vmem [#allocation0], 8
    %s68 = scalar_lea.vmem %s67, 7 [#allocation0]
    %v69 = vld [vmem:[%s68] ss:$-1 sm:$0xff]
    %v70 = vrot.slane %v69, 1
    %v71 = vlaneseq
    %v72 = vshrl.u32 %v71, 7
    %vm73 = vcmp.lt.s32.totalorder %v72, 7
    %74 = vst.msk [vmem:[#allocation1] sm:$0xff] %vm73, %v70
    %s75 = scalar_lea.vmem [#allocation1], 8
    %s76 = scalar_lea.vmem [#allocation0], 16
    %s77 = scalar_lea.vmem %s76, 7 [#allocation0]
    %v78 = vld [vmem:[%s77] ss:$-1 sm:$0xff]
    %v79 = vrot.slane %v78, 1
    %80 = vst [vmem:[%s75] sm:$0xff] %v79
    %s81 = scalar_lea.vmem %s76, 8 [#allocation0]
    %s82 = scalar_lea.vmem %s81, 7 [#allocation0]
    %v83 = vld [vmem:[%s82] ss:$-1 sm:$0xff]
    %v84 = vrot.slane %v83, 1
    %v85 = vlaneseq
    %v86 = vshrl.u32 %v85, 7
    %vm87 = vcmp.lt.s32.totalorder %v86, 7
    %88 = vst.msk [vmem:[%s75] sm:$0xff] %vm87, %v84
    %s89 = scalar_lea.vmem [#allocation1], 16
    %s90 = scalar_lea.vmem [#allocation0], 32
    %s91 = scalar_lea.vmem %s90, 7 [#allocation0]
    %v92 = vld [vmem:[%s91] ss:$-1 sm:$0xff]
    %v93 = vrot.slane %v92, 1
    %94 = vst [vmem:[%s89] sm:$0xff] %v93
    %s95 = scalar_lea.vmem %s90, 8 [#allocation0]
    %s96 = scalar_lea.vmem %s95, 7 [#allocation0]
    %v97 = vld [vmem:[%s96] ss:$-1 sm:$0xff]
    %v98 = vrot.slane %v97, 1
    %v99 = vlaneseq
    %v100 = vshrl.u32 %v99, 7
    %vm101 = vcmp.lt.s32.totalorder %v100, 7
    %102 = vst.msk [vmem:[%s89] sm:$0xff] %vm101, %v98
    %s103 = scalar_lea.vmem [#allocation1], 24
    %s104 = scalar_lea.vmem [#allocation0], 48
    %s105 = scalar_lea.vmem %s104, 7 [#allocation0]
    %v106 = vld [vmem:[%s105] ss:$-1 sm:$0xff]
    %v107 = vrot.slane %v106, 1
    %108 = vst [vmem:[%s103] sm:$0xff] %v107
    %s109 = scalar_lea.vmem %s104, 8 [#allocation0]
    %s110 = scalar_lea.vmem %s109, 7 [#allocation0]
    %v111 = vld [vmem:[%s110] ss:$-1 sm:$0xff]
    %v112 = vrot.slane %v111, 1
    %v113 = vlaneseq
    %v114 = vshrl.u32 %v113, 7
    %vm115 = vcmp.lt.s32.totalorder %v114, 7
    %116 = vst.msk [vmem:[%s103] sm:$0xff] %vm115, %v112
    %s117 = scalar_lea.vmem [#allocation1], 32
    %s118 = scalar_lea.vmem [#allocation0], 64
    %s119 = scalar_lea.vmem %s118, 7 [#allocation0]
    %v120 = vld [vmem:[%s119] ss:$-1 sm:$0xff]
    %v121 = vrot.slane %v120, 1
    %122 = vst [vmem:[%s117] sm:$0xff] %v121
    %s123 = scalar_lea.vmem %s118, 8 [#allocation0]
    %s124 = scalar_lea.vmem %s123, 7 [#allocation0]
    %v125 = vld [vmem:[%s124] ss:$-1 sm:$0xff]
    %v126 = vrot.slane %v125, 1
    %v127 = vlaneseq
    %v128 = vshrl.u32 %v127, 7
    %vm129 = vcmp.lt.s32.totalorder %v128, 7
    %130 = vst.msk [vmem:[%s117] sm:$0xff] %vm129, %v126
    %s131 = scalar_lea.vmem [#allocation1], 40
    %s132 = scalar_lea.vmem [#allocation0], 80
    %s133 = scalar_lea.vmem %s132, 7 [#allocation0]
    %v134 = vld [vmem:[%s133] ss:$-1 sm:$0xff]
    %v135 = vrot.slane %v134, 1
    %136 = vst [vmem:[%s131] sm:$0xff] %v135
    %s137 = scalar_lea.vmem %s132, 8 [#allocation0]
    %s138 = scalar_lea.vmem %s137, 7 [#allocation0]
    %v139 = vld [vmem:[%s138] ss:$-1 sm:$0xff]
    %v140 = vrot.slane %v139, 1
    %v141 = vlaneseq
    %v142 = vshrl.u32 %v141, 7
    %vm143 = vcmp.lt.s32.totalorder %v142, 7
    %144 = vst.msk [vmem:[%s131] sm:$0xff] %vm143, %v140
    %s145 = scalar_lea.vmem [#allocation1], 48
    %s146 = scalar_lea.vmem [#allocation0], 96
    %s147 = scalar_lea.vmem %s146, 7 [#allocation0]
    %v148 = vld [vmem:[%s147] ss:$-1 sm:$0xff]
    %v149 = vrot.slane %v148, 1
    %150 = vst [vmem:[%s145] sm:$0xff] %v149
    %s151 = scalar_lea.vmem %s146, 8 [#allocation0]
    %s152 = scalar_lea.vmem %s151, 7 [#allocation0]
    %v153 = vld [vmem:[%s152] ss:$-1 sm:$0xff]
    %v154 = vrot.slane %v153, 1
    %v155 = vlaneseq
    %v156 = vshrl.u32 %v155, 7
    %vm157 = vcmp.lt.s32.totalorder %v156, 7
    %158 = vst.msk [vmem:[%s145] sm:$0xff] %vm157, %v154
    %s159 = scalar_lea.vmem [#allocation1], 56
    %s160 = scalar_lea.vmem [#allocation0], 112
    %s161 = scalar_lea.vmem %s160, 7 [#allocation0]
    %v162 = vld [vmem:[%s161] ss:$-1 sm:$0xff]
    %v163 = vrot.slane %v162, 1
    %164 = vst [vmem:[%s159] sm:$0xff] %v163
    %s165 = scalar_lea.vmem %s160, 8 [#allocation0]
    %s166 = scalar_lea.vmem %s165, 7 [#allocation0]
    %v167 = vld [vmem:[%s166] ss:$-1 sm:$0xff]
    %v168 = vrot.slane %v167, 1
    %v169 = vlaneseq
    %v170 = vshrl.u32 %v169, 7
    %vm171 = vcmp.lt.s32.totalorder %v170, 7
    %172 = vst.msk [vmem:[%s159] sm:$0xff] %vm171, %v168
    // Predicated region
    $region36: #{reverse.0} parent=1 // pred_check
      _
    $region37: #{reverse.0} parent=1 // pred_check_branch
      %174 = sbr.rel (0) target = $region39
    $region38: #{reverse.0} parent=1 // pred_region
      // Predicated region
      $region40: #{reverse.0} parent=38 // pred_check
        _
      $region41: #{reverse.0} parent=38 // pred_check_branch
        %176 = sbr.rel (0) target = $region43
      $region42: #{reverse.0} parent=38 // pred_region
        // Predicated region
        $region55: #{reverse.0} parent=42 // pred_check
          _
        $region56: #{reverse.0} parent=42 // pred_check_branch
          %205 = sbr.rel (0) target = $region58
        $region57: #{reverse.0} parent=42 // pred_region
          loop: start=0, step=1, limit=1
          $region59: #{reverse.0} parent=57 // loop_pre_header
            _
          $region60: #{reverse.0} parent=57 // loop_header
            %s207 = sphi 0, %s211
            %p208 = scmp.ge.s32.totalorder %s207, 1
            %s212 = sphi [#allocation1], [#allocation1]
            %s213 = sphi %s1, %s1
          $region61: #{reverse.0} parent=57 // loop_header_branch
            %210 = sbr.rel (%p208) target = $region65
          $region62: #{reverse.0} parent=57 // loop_body
            %v214 = vld [vmem:[%s212] sm:$0xff]
            %215 = vst [vmem:[%s213] sm:$0xff] %v214
            %v216 = vld [vmem:[%s212 + $0x8] sm:$0xff]
            %217 = vst [vmem:[%s213 + $0x8] sm:$0xff] %v216
            %v218 = vld [vmem:[%s212 + $0x10] sm:$0xff]
            %219 = vst [vmem:[%s213 + $0x10] sm:$0xff] %v218
            %v220 = vld [vmem:[%s212 + $0x18] sm:$0xff]
            %221 = vst [vmem:[%s213 + $0x18] sm:$0xff] %v220
            %v222 = vld [vmem:[%s212 + $0x20] sm:$0xff]
            %223 = vst [vmem:[%s213 + $0x20] sm:$0xff] %v222
            %v224 = vld [vmem:[%s212 + $0x28] sm:$0xff]
            %225 = vst [vmem:[%s213 + $0x28] sm:$0xff] %v224
            %v226 = vld [vmem:[%s212 + $0x30] sm:$0xff]
            %227 = vst [vmem:[%s213 + $0x30] sm:$0xff] %v226
            %v228 = vld [vmem:[%s212 + $0x38] sm:$0xff]
            %229 = vst [vmem:[%s213 + $0x38] sm:$0xff] %v228
          $region63: #{reverse.0} parent=57 // loop_footer
            %s211 = sadd.s32 1, %s207
          $region64: #{reverse.0} parent=57 // loop_footer_branch
            %206 = sbr.rel target = $region60
          $region65: #{reverse.0} parent=57 // loop_exit
            _
        $region58: #{reverse.0} parent=42 // pred_fallthru
          _
        // Predicated region
        $region66: #{reverse.0} parent=42 // pred_check
          _
        $region67: #{reverse.0} parent=42 // pred_check_branch
          %231 = sbr.rel target = $region69
        $region68: #{reverse.0} parent=42 // pred_region
          _
        $region69: #{reverse.0} parent=42 // pred_fallthru
          _
      $region43: #{reverse.0} parent=38 // pred_fallthru
        _
      // Predicated region
      $region44: #{reverse.0} parent=38 // pred_check
        _
      $region45: #{reverse.0} parent=38 // pred_check_branch
        %178 = sbr.rel target = $region47
      $region46: #{reverse.0} parent=38 // pred_region
        loop: start=0, step=1, limit=1
        $region48: #{reverse.0} parent=46 // loop_pre_header
          _
        $region49: #{reverse.0} parent=46 // loop_header
          %s181 = sphi 0, %s185
          %p182 = scmp.ge.s32.totalorder %s181, 1
          %s186 = sphi [#allocation1], [#allocation1]
          %s187 = sphi %s1, %s1
        $region50: #{reverse.0} parent=46 // loop_header_branch
          %184 = sbr.rel (%p182) target = $region54
        $region51: #{reverse.0} parent=46 // loop_body
          %v188 = vld [vmem:[%s186] sm:$0xff]
          %189 = vst [vmem:[%s187] sm:$0xff] %v188
          %v190 = vld [vmem:[%s186 + $0x8] sm:$0xff]
          %191 = vst [vmem:[%s187 + $0x8] sm:$0xff] %v190
          %v192 = vld [vmem:[%s186 + $0x10] sm:$0xff]
          %193 = vst [vmem:[%s187 + $0x10] sm:$0xff] %v192
          %v194 = vld [vmem:[%s186 + $0x18] sm:$0xff]
          %195 = vst [vmem:[%s187 + $0x18] sm:$0xff] %v194
          %v196 = vld [vmem:[%s186 + $0x20] sm:$0xff]
          %197 = vst [vmem:[%s187 + $0x20] sm:$0xff] %v196
          %v198 = vld [vmem:[%s186 + $0x28] sm:$0xff]
          %199 = vst [vmem:[%s187 + $0x28] sm:$0xff] %v198
          %v200 = vld [vmem:[%s186 + $0x30] sm:$0xff]
          %201 = vst [vmem:[%s187 + $0x30] sm:$0xff] %v200
          %v202 = vld [vmem:[%s186 + $0x38] sm:$0xff]
          %203 = vst [vmem:[%s187 + $0x38] sm:$0xff] %v202
        $region52: #{reverse.0} parent=46 // loop_footer
          %s185 = sadd.s32 1, %s181
        $region53: #{reverse.0} parent=46 // loop_footer_branch
          %180 = sbr.rel target = $region49
        $region54: #{reverse.0} parent=46 // loop_exit
          _
      $region47: #{reverse.0} parent=38 // pred_fallthru
        _
    $region39: #{reverse.0} parent=1 // pred_fallthru
      _
    %232 = vnop

// kernel: spectral_transform_forward.4
$region0: #{spectral_transform_forward.4}
  #allocation0 [shape = 'u32[]', space=smem, size = 0x4, offset = 0x4, fixed_abs, tag = 'smem constant byte address 0x4 - core index']
  #allocation1 [shape = 'u32[144,128]{1,0:T(1,128)}', space=vmem, size = 0x12000, scoped, tag = 'internal scratch']
  %s0 = inlined_call_operand.vmem [shape: f32[2,8,144], index: 0, kind: input, shape index: {}]
  %s1 = inlined_call_operand.vmem [shape: f32[8,8], index: 1, kind: input, shape index: {}]
  %s2 = inlined_call_operand.vmem [shape: f32[8,1], index: 2, kind: input, shape index: {}]
  %s3 = inlined_call_operand.vmem [shape: f32[2,8,144], index: 3, kind: output, shape index: {}]
  %s4 = sld [smem:[#allocation0]]
  $region45: #{spectral_transform_forward.4} parent=0
    _
  %s6 = ssub.s32 1, %s4
  %s7 = scalar_select 0, %s6, %s4
  loop: start=0, step=1, limit=4
  $region2: #{spectral_transform_forward.4} parent=0 // loop_pre_header
    _
  $region3: #{spectral_transform_forward.4} parent=0 // loop_header
    %s9 = sphi 0, %s13
    %p10 = scmp.ge.s32.totalorder %s9, 4
    %s16 = sphi 0, %s28
    %s17 = sphi 0, %s24
    %s18 = sphi 0, %s16
    %s19 = sphi 0, %s17
    %s20 = sphi 0, %s18
    %s21 = sphi 0, %s19
    %s33 = sphi 0, %s35
    %s36 = sphi 0, %s33
    %s37 = sphi 0, %s36
    %s53 = sphi 0, %s37
    %s57 = sphi 0, %s57
    %s59 = sphi 0, %s57
    %s60 = sphi 0, %s59
    %s74 = sphi 0, %s60
    %s78 = sphi 0, %s78
    %s80 = sphi 0, %s78
    %s81 = sphi 0, %s80
    %s95 = sphi 0, %s81
    %s103 = sphi 0, %s105
    %s106 = sphi 0, %s103
    %s107 = sphi 0, %s106
    %s123 = sphi 0, %s107
  $region4: #{spectral_transform_forward.4} parent=0 // loop_header_branch
    %12 = sbr.rel (%p10) target = $region8
  $region5: #{spectral_transform_forward.4} parent=0 // loop_body
    %s14 = ssub.s32 %s9, 1
    %s15 = ssub.s32 %s9, 2
    %s22 = sadd.s32 1, %s17
    %p23 = scmp.ge.s32.totalorder %s22, 1
    %s24 = scalar_select %p23, 0, %s22
    %s25 = sadd.s32 1, %s16
    %s26 = scalar_select %p23, %s25, %s16
    %p27 = scmp.ge.s32.totalorder %s26, 2
    %s28 = scalar_select %p27, 0, %s26
    %s29 = ssub.s32 %s16, %s28
    %s30 = ssub.s32 %s17, %s24
    %s31 = sor.u32 %s29, %s30
    %p32 = scmp.eq.s32.totalorder %s31, 0
    %s34 = sadd.s32 %s33, 1
    %s35 = scalar_select %p32, %s33, %s34
    %p38 = pneg %p32
    %p39 = scmp.eq.s32.totalorder %s9, 1
    %p40 = por %p38, %p39
    %p41 = scmp.ne.s32.totalorder %s33, %s36
    %p42 = scmp.eq.s32.totalorder %s9, 0
    %p43 = por %p41, %p42
    %p44 = scmp.ne.s32.totalorder %s33, %s36
    %p45 = scmp.eq.s32.totalorder %s14, 1
    %p46 = por %p44, %p45
    %p47 = scmp.ne.s32.totalorder %s36, %s37
    %p48 = scmp.eq.s32.totalorder %s14, 0
    %p49 = por %p47, %p48
    %p50 = scmp.ne.s32.totalorder %s36, %s37
    %p51 = scmp.eq.s32.totalorder %s15, 1
    %p52 = por %p50, %p51
    %p54 = scmp.ne.s32.totalorder %s37, %s53
    %p55 = scmp.eq.s32.totalorder %s15, 0
    %p56 = por %p54, %p55
    %s58 = sadd.s32 %s57, 1
    %p61 = scmp.eq.s32.totalorder %s9, 1
    %p62 = scmp.ne.s32.totalorder %s57, %s59
    %p63 = scmp.eq.s32.totalorder %s9, 0
    %p64 = por %p62, %p63
    %p65 = scmp.ne.s32.totalorder %s57, %s59
    %p66 = scmp.eq.s32.totalorder %s14, 1
    %p67 = por %p65, %p66
    %p68 = scmp.ne.s32.totalorder %s59, %s60
    %p69 = scmp.eq.s32.totalorder %s14, 0
    %p70 = por %p68, %p69
    %p71 = scmp.ne.s32.totalorder %s59, %s60
    %p72 = scmp.eq.s32.totalorder %s15, 1
    %p73 = por %p71, %p72
    %p75 = scmp.ne.s32.totalorder %s60, %s74
    %p76 = scmp.eq.s32.totalorder %s15, 0
    %p77 = por %p75, %p76
    %s79 = sadd.s32 %s78, 1
    %p82 = scmp.eq.s32.totalorder %s9, 1
    %p83 = scmp.ne.s32.totalorder %s78, %s80
    %p84 = scmp.eq.s32.totalorder %s9, 0
    %p85 = por %p83, %p84
    %p86 = scmp.ne.s32.totalorder %s78, %s80
    %p87 = scmp.eq.s32.totalorder %s14, 1
    %p88 = por %p86, %p87
    %p89 = scmp.ne.s32.totalorder %s80, %s81
    %p90 = scmp.eq.s32.totalorder %s14, 0
    %p91 = por %p89, %p90
    %p92 = scmp.ne.s32.totalorder %s80, %s81
    %p93 = scmp.eq.s32.totalorder %s15, 1
    %p94 = por %p92, %p93
    %p96 = scmp.ne.s32.totalorder %s81, %s95
    %p97 = scmp.eq.s32.totalorder %s15, 0
    %p98 = por %p96, %p97
    %s99 = ssub.s32 %s16, %s28
    %s100 = ssub.s32 %s17, %s24
    %s101 = sor.u32 %s99, %s100
    %p102 = scmp.eq.s32.totalorder %s101, 0
    %s104 = sadd.s32 %s103, 1
    %s105 = scalar_select %p102, %s103, %s104
    %p108 = pneg %p102
    %p109 = scmp.eq.s32.totalorder %s9, 1
    %p110 = por %p108, %p109
    %p111 = scmp.ne.s32.totalorder %s103, %s106
    %p112 = scmp.eq.s32.totalorder %s9, 0
    %p113 = por %p111, %p112
    %p114 = scmp.ne.s32.totalorder %s103, %s106
    %p115 = scmp.eq.s32.totalorder %s14, 1
    %p116 = por %p114, %p115
    %p117 = scmp.ne.s32.totalorder %s106, %s107
    %p118 = scmp.eq.s32.totalorder %s14, 0
    %p119 = por %p117, %p118
    %p120 = scmp.ne.s32.totalorder %s106, %s107
    %p121 = scmp.eq.s32.totalorder %s15, 1
    %p122 = por %p120, %p121
    %p124 = scmp.ne.s32.totalorder %s107, %s123
    %p125 = scmp.eq.s32.totalorder %s15, 0
    %p126 = por %p124, %p125
    %p127 = scmp.le.s32.totalorder 1, %s9
    %p128 = scmp.lt.s32.totalorder %s9, 3
    %p129 = pnand %p127, %p128
    %p130 = pneg %p129
    // Predicated region
    $region9: #{spectral_transform_forward.4} parent=5 // pred_check
      _
    $region10: #{spectral_transform_forward.4} parent=5 // pred_check_branch
      %132 = sbr.rel (%p129) target = $region12
    $region11: #{spectral_transform_forward.4} parent=5 // pred_region
      %s133 = ssub.s32 %s9, 1
      // Predicated region
      $region13: #{spectral_transform_forward.4} parent=11 // pred_check
        %p134 = pneg %p70
      $region14: #{spectral_transform_forward.4} parent=11 // pred_check_branch
        %136 = sbr.rel (%p134) target = $region16
      $region15: #{spectral_transform_forward.4} parent=11 // pred_region
        _
      $region16: #{spectral_transform_forward.4} parent=11 // pred_fallthru
        _
      // Predicated region
      $region17: #{spectral_transform_forward.4} parent=11 // pred_check
        %p137 = pneg %p91
      $region18: #{spectral_transform_forward.4} parent=11 // pred_check_branch
        %139 = sbr.rel (%p137) target = $region20
      $region19: #{spectral_transform_forward.4} parent=11 // pred_region
        _
      $region20: #{spectral_transform_forward.4} parent=11 // pred_fallthru
        _
    $region12: #{spectral_transform_forward.4} parent=5 // pred_fallthru
      _
    %p140 = scmp.lt.s32.totalorder %s9, 2
    // Predicated region
    $region21: #{spectral_transform_forward.4} parent=5 // pred_check
      %p141 = pneg %p140
    $region22: #{spectral_transform_forward.4} parent=5 // pred_check_branch
      %143 = sbr.rel (%p141) target = $region24
    $region23: #{spectral_transform_forward.4} parent=5 // pred_region
      // Predicated region
      $region25: #{spectral_transform_forward.4} parent=23 // pred_check
        %p144 = pneg %p43
      $region26: #{spectral_transform_forward.4} parent=23 // pred_check_branch
        %146 = sbr.rel (%p144) target = $region28
      $region27: #{spectral_transform_forward.4} parent=23 // pred_region
        %s147 = smul.u32 2, %s17
        %p148 = scmp.lt.s32.totalorder %s16, 1
        %s149 = scalar_select %p148, %s16, 1
        %p150 = scmp.lt.s32.totalorder %s147, 1
        %s151 = scalar_select %p150, %s147, 1
        %s152 = smul.addr %s149, 2
        %s153 = sadd.s32 %s151, %s152
        %s154 = smul.addr %s153, 8
        %s155 = scalar_lea.vmem %s0, %s154
        %s156 = smul.u32 2, %s17
      $region28: #{spectral_transform_forward.4} parent=23 // pred_fallthru
        _
    $region24: #{spectral_transform_forward.4} parent=5 // pred_fallthru
      _
    %p157 = scmp.le.s32.totalorder 1, %s9
    %p158 = scmp.lt.s32.totalorder %s9, 3
    %p159 = pnand %p157, %p158
    %p160 = pneg %p159
    // Predicated region
    $region29: #{spectral_transform_forward.4} parent=5 // pred_check
      _
    $region30: #{spectral_transform_forward.4} parent=5 // pred_check_branch
      %162 = sbr.rel (%p159) target = $region32
    $region31: #{spectral_transform_forward.4} parent=5 // pred_region
      %s163 = ssub.s32 %s9, 1
      %s164 = smul.u32 2, %s19
      %p165 = scmp.lt.s32.totalorder %s18, 1
      %s166 = scalar_select %p165, %s18, 1
      %p167 = scmp.lt.s32.totalorder %s164, 1
      %s168 = scalar_select %p167, %s164, 1
      %s169 = smul.addr %s166, 2
      %s170 = sadd.s32 %s168, %s169
      %s171 = smul.addr %s170, 8
      %s172 = scalar_lea.vmem %s0, %s171
      %p173 = pneg %p49
      %p174 = pneg %p46
      %p175 = pneg %p70
      %p176 = pneg %p67
      %p177 = pneg %p91
      %p178 = pneg %p88
      %p179 = pneg %p119
      %p180 = pneg %p116
      %s181 = smul.u32 2, %s19
      %p182 = scmp.lt.s32.totalorder %s18, 1
      %s183 = scalar_select %p182, %s18, 1
      %p184 = scmp.lt.s32.totalorder %s181, 1
      %s185 = scalar_select %p184, %s181, 1
      %s186 = smul.addr %s183, 2
      %s187 = sadd.s32 %s185, %s186
      %s188 = smul.addr %s187, 8
      %s189 = scalar_lea.vmem %s3, %s188
      %s190 = smul.u32 2, %s19
      %p191 = scmp.lt.s32.totalorder %s18, 1
      %s192 = scalar_select %p191, %s18, 1
      %p193 = scmp.lt.s32.totalorder %s190, 1
      %s194 = scalar_select %p193, %s190, 1
      %s195 = smul.addr %s192, 2
      %s196 = sadd.s32 %s194, %s195
      %s197 = smul.addr %s196, 8
      %s198 = scalar_lea.vmem %s0, %s197
      %s199 = smul.u32 2, %s19
      %s200 = smul.u32 2, %s19
      %p201 = scmp.lt.s32.totalorder %s18, 1
      %s202 = scalar_select %p201, %s18, 1
      %p203 = scmp.lt.s32.totalorder %s200, 1
      %s204 = scalar_select %p203, %s200, 1
      %s205 = smul.addr %s202, 2
      %s206 = sadd.s32 %s204, %s205
      %s207 = smul.addr %s206, 8
      %s208 = scalar_lea.vmem %s3, %s207
      %s209 = smul.u32 2, %s19
      %v210 = vld [vmem:[%s198] sm:$0xff]
      %v211 = vld [vmem:[%s198 + $0x8] sm:$0xff]
      %v212 = vld [vmem:[%s1] sm:$0xff]
      %v213 = vld [vmem:[%s2] sm:$0xff]
      %215 = vset.pattern.permute.xlu0 0
      %216 = vperm.xlu0 %215, %v213
      %v217 = vpop.permute.xlu0 %216
      %vm219 = vcmask 64512
      %v221 = vsel %vm219, %v212, 0
      %223 = vmatprep.subr.mxu0 %v211
      %224 = vmatpush1.msra.mxu0 %v210
      %225 = vmatprep.subr.mxu0 0.0
      %226 = vmatpush1.msra.mxu0 0.0
      %227 = vmatprep.subr.mxu0 0.0
      %228 = vmatpush1.msra.mxu0 0.0
      %229 = vmatprep.subr.mxu0 0.0
      %230 = vmatpush1.msra.mxu0 0.0
      %231 = vmatprep.subr.mxu0 0.0
      %232 = vmatpush1.msra.mxu0 0.0
      %233 = vmatprep.subr.mxu0 0.0
      %234 = vmatpush1.msra.mxu0 0.0
      %235 = vmatprep.subr.mxu0 0.0
      %236 = vmatpush1.msra.mxu0 0.0
      %237 = vmatprep.subr.mxu0 0.0
      %238 = vmatpush1.msra.mxu0 0.0
      %239 = vmatprep.subr.mxu0 0.0
      %240 = vmatpush1.msra.mxu0 0.0
      %241 = vmatprep.subr.mxu0 0.0
      %242 = vmatpush1.msra.mxu0 0.0
      %243 = vmatprep.subr.mxu0 0.0
      %244 = vmatpush1.msra.mxu0 0.0
      %245 = vmatprep.subr.mxu0 0.0
      %246 = vmatpush1.msra.mxu0 0.0
      %247 = vmatprep.subr.mxu0 0.0
      %248 = vmatpush1.msra.mxu0 0.0
      %249 = vmatprep.subr.mxu0 0.0
      %250 = vmatpush1.msra.mxu0 0.0
      %251 = vmatprep.subr.mxu0 0.0
      %252 = vmatpush1.msra.mxu0 0.0
      %253 = vmatprep.subr.mxu0 0.0
      %254 = vmatpush1.msra.mxu0 0.0
      %255 = vmatprep.subr.mxu0 0.0
      %256 = vmatpush1.msra.mxu0 0.0
      %257 = vmatprep.subr.mxu0 0.0
      %258 = vmatpush1.msra.mxu0 0.0
      %259 = vmatprep.subr.mxu0 0.0
      %260 = vmatpush1.msra.mxu0 0.0
      %261 = vmatprep.subr.mxu0 0.0
      %262 = vmatpush1.msra.mxu0 0.0
      %263 = vmatprep.subr.mxu0 0.0
      %264 = vmatpush1.msra.mxu0 0.0
      %265 = vmatprep.subr.mxu0 0.0
      %266 = vmatpush1.msra.mxu0 0.0
      %267 = vmatprep.subr.mxu0 0.0
      %268 = vmatpush1.msra.mxu0 0.0
      %269 = vmatprep.subr.mxu0 0.0
      %270 = vmatpush1.msra.mxu0 0.0
      %271 = vmatprep.subr.mxu0 0.0
      %272 = vmatpush1.msra.mxu0 0.0
      %273 = vmatprep.subr.mxu0 0.0
      %274 = vmatpush1.msra.mxu0 0.0
      %275 = vmatprep.subr.mxu0 0.0
      %276 = vmatpush1.msra.mxu0 0.0
      %277 = vmatprep.subr.mxu0 0.0
      %278 = vmatpush1.msra.mxu0 0.0
      %279 = vmatprep.subr.mxu0 0.0
      %280 = vmatpush1.msra.mxu0 0.0
      %281 = vmatprep.subr.mxu0 0.0
      %282 = vmatpush1.msra.mxu0 0.0
      %283 = vmatprep.subr.mxu0 0.0
      %284 = vmatpush1.msra.mxu0 0.0
      %285 = vmatprep.subr.mxu0 0.0
      %286 = vmatpush1.msra.mxu0 0.0
      %287 = vmatprep.mubr.f32.mxu0 0.0
      %288 = vmatmul.mubr.f32.gmra.mrb[0].mxu0 %v221
      %v289 = vpop.f32.mrb[0].mxu0
      %v290 = vadd.f32 %v217, %v289
      %v291 = vpop.f32.mrb[0].mxu0
      %v292 = vadd.f32 %v217, %v291
      %293 = vdwg.mxu0
      %v294 = vmax.f32 %v290, 0.0
      %v295 = vmax.f32 %v292, 0.0
      %296 = vst [vmem:[%s208] sm:$0xff] %v294
      %297 = vst [vmem:[%s208 + $0x8] sm:$0xff] %v295
      %s298 = smul.u32 2, %s19
      %p299 = scmp.lt.s32.totalorder %s18, 1
      %s300 = scalar_select %p299, %s18, 1
      %p301 = scmp.lt.s32.totalorder %s298, 1
      %s302 = scalar_select %p301, %s298, 1
      %s303 = smul.addr %s300, 2
      %s304 = sadd.s32 %s302, %s303
      %s305 = smul.addr %s304, 8
      %s306 = scalar_lea.vmem %s3, %s305
      // Predicated region
      $region33: #{spectral_transform_forward.4} parent=31 // pred_check
        %p307 = pneg %p116
      $region34: #{spectral_transform_forward.4} parent=31 // pred_check_branch
        %309 = sbr.rel (%p307) target = $region36
      $region35: #{spectral_transform_forward.4} parent=31 // pred_region
        %s310 = smul.u32 2, %s19
      $region36: #{spectral_transform_forward.4} parent=31 // pred_fallthru
        _
    $region32: #{spectral_transform_forward.4} parent=5 // pred_fallthru
      _
    %p311 = scmp.le.s32.totalorder 2, %s9
    // Predicated region
    $region37: #{spectral_transform_forward.4} parent=5 // pred_check
      %p312 = pneg %p311
    $region38: #{spectral_transform_forward.4} parent=5 // pred_check_branch
      %314 = sbr.rel (%p312) target = $region40
    $region39: #{spectral_transform_forward.4} parent=5 // pred_region
      %s315 = ssub.s32 %s9, 2
      // Predicated region
      $region41: #{spectral_transform_forward.4} parent=39 // pred_check
        %p316 = pneg %p122
      $region42: #{spectral_transform_forward.4} parent=39 // pred_check_branch
        %318 = sbr.rel (%p316) target = $region44
      $region43: #{spectral_transform_forward.4} parent=39 // pred_region
        %s319 = smul.u32 2, %s21
        %p320 = scmp.lt.s32.totalorder %s20, 1
        %s321 = scalar_select %p320, %s20, 1
        %p322 = scmp.lt.s32.totalorder %s319, 1
        %s323 = scalar_select %p322, %s319, 1
        %s324 = smul.addr %s321, 2
        %s325 = sadd.s32 %s323, %s324
        %s326 = smul.addr %s325, 8
        %s327 = scalar_lea.vmem %s3, %s326
      $region44: #{spectral_transform_forward.4} parent=39 // pred_fallthru
        _
    $region40: #{spectral_transform_forward.4} parent=5 // pred_fallthru
      _
  $region6: #{spectral_transform_forward.4} parent=0 // loop_footer
    %s13 = sadd.s32 1, %s9
  $region7: #{spectral_transform_forward.4} parent=0 // loop_footer_branch
    %8 = sbr.rel target = $region3
  $region8: #{spectral_transform_forward.4} parent=0 // loop_exit
    _

// kernel: spectral_transform_forward.5
$region0: #{spectral_transform_forward.5}
  #allocation0 [shape = 'u32[]', space=smem, size = 0x4, offset = 0x4, fixed_abs, tag = 'smem constant byte address 0x4 - core index']
  #allocation1 [shape = 'u32[144,128]{1,0:T(1,128)}', space=vmem, size = 0x12000, scoped, tag = 'internal scratch']
  %s0 = inlined_call_operand.vmem [shape: bf16[2,4,256], index: 0, kind: input, shape index: {}]
  %s1 = inlined_call_operand.vmem [shape: f32[2,4,256], index: 1, kind: input, shape index: {}]
  %s2 = inlined_call_operand.vmem [shape: f32[8,4], index: 2, kind: input, shape index: {}]
  %s3 = inlined_call_operand.vmem [shape: f32[2,8,256], index: 3, kind: output, shape index: {}]
  %s4 = sld [smem:[#allocation0]]
  $region45: #{spectral_transform_forward.5} parent=0
    _
  %s6 = ssub.s32 1, %s4
  %s7 = scalar_select 0, %s6, %s4
  loop: start=0, step=1, limit=4
  $region2: #{spectral_transform_forward.5} parent=0 // loop_pre_header
    _
  $region3: #{spectral_transform_forward.5} parent=0 // loop_header
    %s9 = sphi 0, %s13
    %p10 = scmp.ge.s32.totalorder %s9, 4
    %s16 = sphi 0, %s28
    %s17 = sphi 0, %s24
    %s18 = sphi 0, %s16
    %s19 = sphi 0, %s17
    %s20 = sphi 0, %s18
    %s21 = sphi 0, %s19
    %s33 = sphi 0, %s35
    %s36 = sphi 0, %s33
    %s37 = sphi 0, %s36
    %s53 = sphi 0, %s37
    %s61 = sphi 0, %s63
    %s64 = sphi 0, %s61
    %s65 = sphi 0, %s64
    %s81 = sphi 0, %s65
    %s85 = sphi 0, %s85
    %s87 = sphi 0, %s85
    %s88 = sphi 0, %s87
    %s102 = sphi 0, %s88
    %s110 = sphi 0, %s112
    %s113 = sphi 0, %s110
    %s114 = sphi 0, %s113
    %s130 = sphi 0, %s114
  $region4: #{spectral_transform_forward.5} parent=0 // loop_header_branch
    %12 = sbr.rel (%p10) target = $region8
  $region5: #{spectral_transform_forward.5} parent=0 // loop_body
    %s14 = ssub.s32 %s9, 1
    %s15 = ssub.s32 %s9, 2
    %s22 = sadd.s32 1, %s17
    %p23 = scmp.ge.s32.totalorder %s22, 1
    %s24 = scalar_select %p23, 0, %s22
    %s25 = sadd.s32 1, %s16
    %s26 = scalar_select %p23, %s25, %s16
    %p27 = scmp.ge.s32.totalorder %s26, 2
    %s28 = scalar_select %p27, 0, %s26
    %s29 = ssub.s32 %s16, %s28
    %s30 = ssub.s32 %s17, %s24
    %s31 = sor.u32 %s29, %s30
    %p32 = scmp.eq.s32.totalorder %s31, 0
    %s34 = sadd.s32 %s33, 1
    %s35 = scalar_select %p32, %s33, %s34
    %p38 = pneg %p32
    %p39 = scmp.eq.s32.totalorder %s9, 1
    %p40 = por %p38, %p39
    %p41 = scmp.ne.s32.totalorder %s33, %s36
    %p42 = scmp.eq.s32.totalorder %s9, 0
    %p43 = por %p41, %p42
    %p44 = scmp.ne.s32.totalorder %s33, %s36
    %p45 = scmp.eq.s32.totalorder %s14, 1
    %p46 = por %p44, %p45
    %p47 = scmp.ne.s32.totalorder %s36, %s37
    %p48 = scmp.eq.s32.totalorder %s14, 0
    %p49 = por %p47, %p48
    %p50 = scmp.ne.s32.totalorder %s36, %s37
    %p51 = scmp.eq.s32.totalorder %s15, 1
    %p52 = por %p50, %p51
    %p54 = scmp.ne.s32.totalorder %s37, %s53
    %p55 = scmp.eq.s32.totalorder %s15, 0
    %p56 = por %p54, %p55
    %s57 = ssub.s32 %s16, %s28
    %s58 = ssub.s32 %s17, %s24
    %s59 = sor.u32 %s57, %s58
    %p60 = scmp.eq.s32.totalorder %s59, 0
    %s62 = sadd.s32 %s61, 1
    %s63 = scalar_select %p60, %s61, %s62
    %p66 = pneg %p60
    %p67 = scmp.eq.s32.totalorder %s9, 1
    %p68 = por %p66, %p67
    %p69 = scmp.ne.s32.totalorder %s61, %s64
    %p70 = scmp.eq.s32.totalorder %s9, 0
    %p71 = por %p69, %p70
    %p72 = scmp.ne.s32.totalorder %s61, %s64
    %p73 = scmp.eq.s32.totalorder %s14, 1
    %p74 = por %p72, %p73
    %p75 = scmp.ne.s32.totalorder %s64, %s65
    %p76 = scmp.eq.s32.totalorder %s14, 0
    %p77 = por %p75, %p76
    %p78 = scmp.ne.s32.totalorder %s64, %s65
    %p79 = scmp.eq.s32.totalorder %s15, 1
    %p80 = por %p78, %p79
    %p82 = scmp.ne.s32.totalorder %s65, %s81
    %p83 = scmp.eq.s32.totalorder %s15, 0
    %p84 = por %p82, %p83
    %s86 = sadd.s32 %s85, 1
    %p89 = scmp.eq.s32.totalorder %s9, 1
    %p90 = scmp.ne.s32.totalorder %s85, %s87
    %p91 = scmp.eq.s32.totalorder %s9, 0
    %p92 = por %p90, %p91
    %p93 = scmp.ne.s32.totalorder %s85, %s87
    %p94 = scmp.eq.s32.totalorder %s14, 1
    %p95 = por %p93, %p94
    %p96 = scmp.ne.s32.totalorder %s87, %s88
    %p97 = scmp.eq.s32.totalorder %s14, 0
    %p98 = por %p96, %p97
    %p99 = scmp.ne.s32.totalorder %s87, %s88
    %p100 = scmp.eq.s32.totalorder %s15, 1
    %p101 = por %p99, %p100
    %p103 = scmp.ne.s32.totalorder %s88, %s102
    %p104 = scmp.eq.s32.totalorder %s15, 0
    %p105 = por %p103, %p104
    %s106 = ssub.s32 %s16, %s28
    %s107 = ssub.s32 %s17, %s24
    %s108 = sor.u32 %s106, %s107
    %p109 = scmp.eq.s32.totalorder %s108, 0
    %s111 = sadd.s32 %s110, 1
    %s112 = scalar_select %p109, %s110, %s111
    %p115 = pneg %p109
    %p116 = scmp.eq.s32.totalorder %s9, 1
    %p117 = por %p115, %p116
    %p118 = scmp.ne.s32.totalorder %s110, %s113
    %p119 = scmp.eq.s32.totalorder %s9, 0
    %p120 = por %p118, %p119
    %p121 = scmp.ne.s32.totalorder %s110, %s113
    %p122 = scmp.eq.s32.totalorder %s14, 1
    %p123 = por %p121, %p122
    %p124 = scmp.ne.s32.totalorder %s113, %s114
    %p125 = scmp.eq.s32.totalorder %s14, 0
    %p126 = por %p124, %p125
    %p127 = scmp.ne.s32.totalorder %s113, %s114
    %p128 = scmp.eq.s32.totalorder %s15, 1
    %p129 = por %p127, %p128
    %p131 = scmp.ne.s32.totalorder %s114, %s130
    %p132 = scmp.eq.s32.totalorder %s15, 0
    %p133 = por %p131, %p132
    %p134 = scmp.le.s32.totalorder 1, %s9
    %p135 = scmp.lt.s32.totalorder %s9, 3
    %p136 = pnand %p134, %p135
    %p137 = pneg %p136
    // Predicated region
    $region9: #{spectral_transform_forward.5} parent=5 // pred_check
      _
    $region10: #{spectral_transform_forward.5} parent=5 // pred_check_branch
      %139 = sbr.rel (%p136) target = $region12
    $region11: #{spectral_transform_forward.5} parent=5 // pred_region
      %s140 = ssub.s32 %s9, 1
      // Predicated region
      $region13: #{spectral_transform_forward.5} parent=11 // pred_check
        %p141 = pneg %p98
      $region14: #{spectral_transform_forward.5} parent=11 // pred_check_branch
        %143 = sbr.rel (%p141) target = $region16
      $region15: #{spectral_transform_forward.5} parent=11 // pred_region
        _
      $region16: #{spectral_transform_forward.5} parent=11 // pred_fallthru
        _
    $region12: #{spectral_transform_forward.5} parent=5 // pred_fallthru
      _
    %p144 = scmp.lt.s32.totalorder %s9, 2
    // Predicated region
    $region17: #{spectral_transform_forward.5} parent=5 // pred_check
      %p145 = pneg %p144
    $region18: #{spectral_transform_forward.5} parent=5 // pred_check_branch
      %147 = sbr.rel (%p145) target = $region20
    $region19: #{spectral_transform_forward.5} parent=5 // pred_region
      // Predicated region
      $region21: #{spectral_transform_forward.5} parent=19 // pred_check
        %p148 = pneg %p43
      $region22: #{spectral_transform_forward.5} parent=19 // pred_check_branch
        %150 = sbr.rel (%p148) target = $region24
      $region23: #{spectral_transform_forward.5} parent=19 // pred_region
        %s151 = smul.u32 2, %s17
        %p152 = scmp.lt.s32.totalorder %s16, 1
        %s153 = scalar_select %p152, %s16, 1
        %p154 = scmp.lt.s32.totalorder %s151, 1
        %s155 = scalar_select %p154, %s151, 1
        %s156 = smul.addr %s153, 2
        %s157 = sadd.s32 %s155, %s156
        %s158 = smul.addr %s157, 2
        %s159 = scalar_lea.vmem %s0, %s158
        %s160 = smul.u32 2, %s17
      $region24: #{spectral_transform_forward.5} parent=19 // pred_fallthru
        _
      // Predicated region
      $region25: #{spectral_transform_forward.5} parent=19 // pred_check
        %p161 = pneg %p71
      $region26: #{spectral_transform_forward.5} parent=19 // pred_check_branch
        %163 = sbr.rel (%p161) target = $region28
      $region27: #{spectral_transform_forward.5} parent=19 // pred_region
        %s164 = smul.u32 2, %s17
        %p165 = scmp.lt.s32.totalorder %s16, 1
        %s166 = scalar_select %p165, %s16, 1
        %p167 = scmp.lt.s32.totalorder %s164, 1
        %s168 = scalar_select %p167, %s164, 1
        %s169 = smul.addr %s166, 2
        %s170 = sadd.s32 %s168, %s169
        %s171 = smul.addr %s170, 4
        %s172 = scalar_lea.vmem %s1, %s171
        %s173 = smul.u32 2, %s17
      $region28: #{spectral_transform_forward.5} parent=19 // pred_fallthru
        _
    $region20: #{spectral_transform_forward.5} parent=5 // pred_fallthru
      _
    %p174 = scmp.le.s32.totalorder 1, %s9
    %p175 = scmp.lt.s32.totalorder %s9, 3
    %p176 = pnand %p174, %p175
    %p177 = pneg %p176
    // Predicated region
    $region29: #{spectral_transform_forward.5} parent=5 // pred_check
      _
    $region30: #{spectral_transform_forward.5} parent=5 // pred_check_branch
      %179 = sbr.rel (%p176) target = $region32
    $region31: #{spectral_transform_forward.5} parent=5 // pred_region
      %s180 = ssub.s32 %s9, 1
      %s181 = smul.u32 2, %s19
      %p182 = scmp.lt.s32.totalorder %s18, 1
      %s183 = scalar_select %p182, %s18, 1
      %p184 = scmp.lt.s32.totalorder %s181, 1
      %s185 = scalar_select %p184, %s181, 1
      %s186 = smul.addr %s183, 2
      %s187 = sadd.s32 %s185, %s186
      %s188 = smul.addr %s187, 2
      %s189 = scalar_lea.vmem %s0, %s188
      %p190 = pneg %p49
      %p191 = pneg %p46
      %s192 = smul.u32 2, %s19
      %p193 = scmp.lt.s32.totalorder %s18, 1
      %s194 = scalar_select %p193, %s18, 1
      %p195 = scmp.lt.s32.totalorder %s192, 1
      %s196 = scalar_select %p195, %s192, 1
      %s197 = smul.addr %s194, 2
      %s198 = sadd.s32 %s196, %s197
      %s199 = smul.addr %s198, 4
      %s200 = scalar_lea.vmem %s1, %s199
      %p201 = pneg %p77
      %p202 = pneg %p74
      %p203 = pneg %p98
      %p204 = pneg %p95
      %p205 = pneg %p126
      %p206 = pneg %p123
      %s207 = smul.u32 2, %s19
      %p208 = scmp.lt.s32.totalorder %s18, 1
      %s209 = scalar_select %p208, %s18, 1
      %p210 = scmp.lt.s32.totalorder %s207, 1
      %s211 = scalar_select %p210, %s207, 1
      %s212 = smul.addr %s209, 2
      %s213 = sadd.s32 %s211, %s212
      %s214 = smul.addr %s213, 8
      %s215 = scalar_lea.vmem %s3, %s214
      %s216 = smul.u32 2, %s19
      %p217 = scmp.lt.s32.totalorder %s18, 1
      %s218 = scalar_select %p217, %s18, 1
      %p219 = scmp.lt.s32.totalorder %s216, 1
      %s220 = scalar_select %p219, %s216, 1
      %s221 = smul.addr %s218, 2
      %s222 = sadd.s32 %s220, %s221
      %s223 = smul.addr %s222, 2
      %s224 = scalar_lea.vmem %s0, %s223
      %s225 = smul.u32 2, %s19
      %s226 = smul.u32 2, %s19
      %p227 = scmp.lt.s32.totalorder %s18, 1
      %s228 = scalar_select %p227, %s18, 1
      %p229 = scmp.lt.s32.totalorder %s226, 1
      %s230 = scalar_select %p229, %s226, 1
      %s231 = smul.addr %s228, 2
      %s232 = sadd.s32 %s230, %s231
      %s233 = smul.addr %s232, 4
      %s234 = scalar_lea.vmem %s1, %s233
      %s235 = smul.u32 2, %s19
      %s236 = smul.u32 2, %s19
      %p237 = scmp.lt.s32.totalorder %s18, 1
      %s238 = scalar_select %p237, %s18, 1
      %p239 = scmp.lt.s32.totalorder %s236, 1
      %s240 = scalar_select %p239, %s236, 1
      %s241 = smul.addr %s238, 2
      %s242 = sadd.s32 %s240, %s241
      %s243 = smul.addr %s242, 8
      %s244 = scalar_lea.vmem %s3, %s243
      %s245 = smul.u32 2, %s19
      %v246 = vld [vmem:[%s224] sm:$0xf]
      %v247 = vunpack.c.l.bf16 %v246
      %v248 = vld [vmem:[%s234] sm:$0xff]
      %v249 = vadd.f32 %v247, %v248
      %v250 = vld [vmem:[%s2] sm:$0xff]
      %v252 = vcombine.high %v249, %v249
      %vm253 = vcmask 31744
      %v255 = vsel %vm253, %v250, 0
      %vm257 = vcmask 1043456
      %v258 = vsel %vm257, %v249, 0
      %v260 = vsel %vm257, %v252, 0
      %262 = vmatprep.subr.mxu0 %v260
      %263 = vmatpush1.msra.mxu0 %v258
      %264 = vmatprep.subr.mxu0 0.0
      %265 = vmatpush1.msra.mxu0 0.0
      %266 = vmatprep.subr.mxu0 0.0
      %267 = vmatpush1.msra.mxu0 0.0
      %268 = vmatprep.subr.mxu0 0.0
      %269 = vmatpush1.msra.mxu0 0.0
      %270 = vmatprep.subr.mxu0 0.0
      %271 = vmatpush1.msra.mxu0 0.0
      %272 = vmatprep.subr.mxu0 0.0
      %273 = vmatpush1.msra.mxu0 0.0
      %274 = vmatprep.subr.mxu0 0.0
      %275 = vmatpush1.msra.mxu0 0.0
      %276 = vmatprep.subr.mxu0 0.0
      %277 = vmatpush1.msra.mxu0 0.0
      %278 = vmatprep.subr.mxu0 0.0
      %279 = vmatpush1.msra.mxu0 0.0
      %280 = vmatprep.subr.mxu0 0.0
      %281 = vmatpush1.msra.mxu0 0.0
      %282 = vmatprep.subr.mxu0 0.0
      %283 = vmatpush1.msra.mxu0 0.0
      %284 = vmatprep.subr.mxu0 0.0
      %285 = vmatpush1.msra.mxu0 0.0
      %286 = vmatprep.subr.mxu0 0.0
      %287 = vmatpush1.msra.mxu0 0.0
      %288 = vmatprep.subr.mxu0 0.0
      %289 = vmatpush1.msra.mxu0 0.0
      %290 = vmatprep.subr.mxu0 0.0
      %291 = vmatpush1.msra.mxu0 0.0
      %292 = vmatprep.subr.mxu0 0.0
      %293 = vmatpush1.msra.mxu0 0.0
      %294 = vmatprep.subr.mxu0 0.0
      %295 = vmatpush1.msra.mxu0 0.0
      %296 = vmatprep.subr.mxu0 0.0
      %297 = vmatpush1.msra.mxu0 0.0
      %298 = vmatprep.subr.mxu0 0.0
      %299 = vmatpush1.msra.mxu0 0.0
      %300 = vmatprep.subr.mxu0 0.0
      %301 = vmatpush1.msra.mxu0 0.0
      %302 = vmatprep.subr.mxu0 0.0
      %303 = vmatpush1.msra.mxu0 0.0
      %304 = vmatprep.subr.mxu0 0.0
      %305 = vmatpush1.msra.mxu0 0.0
      %306 = vmatprep.subr.mxu0 0.0
      %307 = vmatpush1.msra.mxu0 0.0
      %308 = vmatprep.subr.mxu0 0.0
      %309 = vmatpush1.msra.mxu0 0.0
      %310 = vmatprep.subr.mxu0 0.0
      %311 = vmatpush1.msra.mxu0 0.0
      %312 = vmatprep.subr.mxu0 0.0
      %313 = vmatpush1.msra.mxu0 0.0
      %314 = vmatprep.subr.mxu0 0.0
      %315 = vmatpush1.msra.mxu0 0.0
      %316 = vmatprep.subr.mxu0 0.0
      %317 = vmatpush1.msra.mxu0 0.0
      %318 = vmatprep.subr.mxu0 0.0
      %319 = vmatpush1.msra.mxu0 0.0
      %320 = vmatprep.subr.mxu0 0.0
      %321 = vmatpush1.msra.mxu0 0.0
      %322 = vmatprep.subr.mxu0 0.0
      %323 = vmatpush1.msra.mxu0 0.0
      %324 = vmatprep.subr.mxu0 0.0
      %325 = vmatpush1.msra.mxu0 0.0
      %326 = vmatprep.mubr.f32.mxu0 0.0
      %327 = vmatmul.mubr.f32.gmra.mrb[0].mxu0 %v255
      %v328 = vpop.f32.mrb[0].mxu0
      %v329 = vadd.f32 0.0, %v328
      %v330 = vpop.f32.mrb[0].mxu0
      %v331 = vadd.f32 0.0, %v330
      %332 = vdwg.mxu0
      %333 = vst [vmem:[%s244] sm:$0xff] %v329
      %334 = vst [vmem:[%s244 + $0x8] sm:$0xff] %v331
      %s335 = smul.u32 2, %s19
      %p336 = scmp.lt.s32.totalorder %s18, 1
      %s337 = scalar_select %p336, %s18, 1
      %p338 = scmp.lt.s32.totalorder %s335, 1
      %s339 = scalar_select %p338, %s335, 1
      %s340 = smul.addr %s337, 2
      %s341 = sadd.s32 %s339, %s340
      %s342 = smul.addr %s341, 8
      %s343 = scalar_lea.vmem %s3, %s342
      // Predicated region
      $region33: #{spectral_transform_forward.5} parent=31 // pred_check
        %p344 = pneg %p123
      $region34: #{spectral_transform_forward.5} parent=31 // pred_check_branch
        %346 = sbr.rel (%p344) target = $region36
      $region35: #{spectral_transform_forward.5} parent=31 // pred_region
        %s347 = smul.u32 2, %s19
      $region36: #{spectral_transform_forward.5} parent=31 // pred_fallthru
        _
    $region32: #{spectral_transform_forward.5} parent=5 // pred_fallthru
      _
    %p348 = scmp.le.s32.totalorder 2, %s9
    // Predicated region
    $region37: #{spectral_transform_forward.5} parent=5 // pred_check
      %p349 = pneg %p348
    $region38: #{spectral_transform_forward.5} parent=5 // pred_check_branch
      %351 = sbr.rel (%p349) target = $region40
    $region39: #{spectral_transform_forward.5} parent=5 // pred_region
      %s352 = ssub.s32 %s9, 2
      // Predicated region
      $region41: #{spectral_transform_forward.5} parent=39 // pred_check
        %p353 = pneg %p129
      $region42: #{spectral_transform_forward.5} parent=39 // pred_check_branch
        %355 = sbr.rel (%p353) target = $region44
      $region43: #{spectral_transform_forward.5} parent=39 // pred_region
        %s356 = smul.u32 2, %s21
        %p357 = scmp.lt.s32.totalorder %s20, 1
        %s358 = scalar_select %p357, %s20, 1
        %p359 = scmp.lt.s32.totalorder %s356, 1
        %s360 = scalar_select %p359, %s356, 1
        %s361 = smul.addr %s358, 2
        %s362 = sadd.s32 %s360, %s361
        %s363 = smul.addr %s362, 8
        %s364 = scalar_lea.vmem %s3, %s363
      $region44: #{spectral_transform_forward.5} parent=39 // pred_fallthru
        _
    $region40: #{spectral_transform_forward.5} parent=5 // pred_fallthru
      _
  $region6: #{spectral_transform_forward.5} parent=0 // loop_footer
    %s13 = sadd.s32 1, %s9
  $region7: #{spectral_transform_forward.5} parent=0 // loop_footer_branch
    %8 = sbr.rel target = $region3
  $region8: #{spectral_transform_forward.5} parent=0 // loop_exit
    _

</llo_original>
